<compile_context>
chip_gen: v6e
topology: v6e:2x2x1
jax: 0.10.0
libtpu: 0.0.40
codegen_flags: <defaults>
</compile_context>

<pallas_src>
import functools
import numpy as np
import jax
import jax.numpy as jnp
from jax.experimental import pallas as pl
from jax.experimental.pallas import tpu as pltpu


# ----------------------------- Pallas kernel ------------------------------- #

def gat_graph_kernel(x_ref, adj_ref, bmask_ref, *rest,
                     heads, out_channels, num_layers, nodes):
    """One grid step = one graph: num_layers x (GATConv + tanh) -> cat(max,mean) pool."""
    layer_refs = rest[:2 * num_layers]          # (w_aug_0, bias_0, w_aug_1, bias_1, ...)
    pooled_ref = rest[2 * num_layers]

    H, C, n = heads, out_channels, nodes
    HID = H * C
    neg = jnp.float32(-1e30)

    # Additive edge mask for this graph, tiled across the H head segments.  Hoisted out
    # of the layer loop (layer-/head-invariant).  adj arrives as int8 -> 4x smaller DMA.
    adj = adj_ref[0].astype(jnp.float32)                            # (n, n)
    ebias = jnp.where(adj > 0.0, jnp.float32(0.0), neg)             # (n, n)
    ebias_slab = jnp.concatenate([ebias] * H, axis=1)               # (n, H*n)

    bmask = bmask_ref[...]                                          # (H*n, HID) 0/1

    h = x_ref[...]                                                  # (n, F_in)
    for li in range(num_layers):                  # static loop, traced per layer
        w_aug = layer_refs[2 * li][...]           # (F_in, HID + H + H*n)
        bias = layer_refs[2 * li + 1][...]        # (1, HID)

        # One MXU pass yields: per-head features, per-head src logit columns, AND the
        # dst logits already lane-expanded to the (n, H*n) slab layout (the replication
        # is folded into w_aug on the host -> no in-kernel repeat/broadcast relayout).
        z = jnp.dot(h, w_aug, preferred_element_type=jnp.float32)   # (n, HID + H + H*n)
        xw = z[:, :HID]                                             # (n, HID)
        src_cols = z[:, HID:HID + H]                                # (n, H)
        dst_slab = z[:, HID + H:]                                   # (n, H*n)

        # ONE small XLU transpose per layer (was H transposes of (n,1) slices); its rows
        # are lane-concatenated head-major to match the slab layout.
        srcT = src_cols.T                                           # (H, n)
        src_slab = jnp.concatenate([srcT[hh:hh + 1, :] for hh in range(H)],
                                   axis=1)                          # (1, H*n)

        # All heads at once on wide lanes.
        e = dst_slab + src_slab                                     # (n, H*n)
        e = jnp.where(e > 0, e, 0.2 * e)                            # LeakyReLU(0.2)
        e = e + ebias_slab                                          # mask non-edges
        # Overflow guard: subtract the per-row max of the whole head slab.  A per-row
        # constant leaves every head's softmax unchanged; self loops keep the max
        # finite, so masked lanes still exp() to exactly 0.
        e = e - jnp.max(e, axis=-1, keepdims=True)
        p = jnp.exp(e)                                              # (n, H*n)

        # One fused MXU call: [p_0|..|p_{H-1}] @ [blockdiag(xw_h) | blockmask] yields
        # all heads' aggregates AND all per-head softmax denominators (the denominator
        # comes out pre-broadcast over each head's C output columns).
        rhs = jnp.concatenate(
            [jnp.concatenate([xw] * H, axis=0) * bmask, bmask], axis=1)   # (H*n, 2*HID)
        agg_den = jnp.dot(p, rhs, preferred_element_type=jnp.float32)     # (n, 2*HID)
        agg = agg_den[:, :HID]
        den = agg_den[:, HID:]

        # Normalize AFTER aggregation (O(n*HID) divides) on the otherwise-idle EUP.
        h = jnp.tanh(agg * pl.reciprocal(den, approx=True) + bias)        # (n, HID)
        # TODO(synk): attention dropout (p=0.1) is training-only; eval-mode identity.

    # cat([global_max_pool, global_mean_pool]) for this graph: local sublane reduces,
    # one lane-contiguous store.
    mx = jnp.max(h, axis=0, keepdims=True)                           # (1, HID)
    mean = jnp.sum(h, axis=0, keepdims=True) * jnp.float32(1.0 / n)  # (1, HID)
    pooled_ref[0] = jnp.concatenate([mx, mean], axis=1)              # (1, 2*HID)


# ------------------------------ JAX wrapper --------------------------------- #

def _fold_layer_weights(w, asrc, adst, heads, emb, nodes):
    """w_aug = [W | W_h@a_src_h | repeat(W_h@a_dst_h, nodes)]: one x @ w_aug matmul
    yields per-head features, src logit columns, and the dst logits already
    lane-expanded to the (n, H*n) attention-slab layout."""
    w3 = w.reshape(w.shape[0], heads, emb)
    w_src = jnp.einsum("fhc,hc->fh", w3, asrc)             # (F_in, H)
    w_dst = jnp.einsum("fhc,hc->fh", w3, adst)             # (F_in, H)
    w_dst_rep = jnp.repeat(w_dst, nodes, axis=1)           # (F_in, H*n)
    return jnp.concatenate([w, w_src, w_dst_rep], axis=1)  # (F_in, HID + H + H*n)


def _make_block_mask(heads, emb, nodes):
    """(H*n, H*C) 0/1 mask: head h's source rows select head h's output columns."""
    m = np.zeros((heads * nodes, heads * emb), np.float32)
    for hh in range(heads):
        m[hh * nodes:(hh + 1) * nodes, hh * emb:(hh + 1) * emb] = 1.0
    return jnp.asarray(m)


def gat_loop_forward(x, adj_blocks, params, *, heads, emb, nodes_per_graph):
    """x: (N, F_in) node features with graphs batched contiguously and equal-sized;
    adj_blocks: (B, n, n) int8 per-graph adjacency (self loops included)."""
    # TODO(synk): ragged graphs (variable nodes/graph) need scalar-prefetch node counts
    # + in-tile row masking; this kernel assumes equal-size, contiguously batched graphs.
    num_layers = len(params["w"])
    B, n, _ = adj_blocks.shape
    HID = heads * emb
    F_in0 = x.shape[1]

    bmask = _make_block_mask(heads, emb, n)

    layer_inputs, layer_specs = [], []
    for li in range(num_layers):
        w_aug = _fold_layer_weights(params["w"][li], params["asrc"][li],
                                    params["adst"][li], heads, emb, n)
        bias = params["bias"][li]
        layer_inputs += [w_aug, bias]
        layer_specs += [pl.BlockSpec(w_aug.shape, lambda g: (0, 0)),
                        pl.BlockSpec(bias.shape, lambda g: (0, 0))]

    kernel = functools.partial(gat_graph_kernel, heads=heads, out_channels=emb,
                               num_layers=num_layers, nodes=n)

    # Grid over graphs: the block-diagonal adjacency makes every graph independent, so
    # attention / exp / aggregation / pooling are all (n x n)-local.  "parallel" lets
    # v7x's two TensorCores split the graph axis; on v5e/v6e the ~0.35us/step grid
    # overhead is negligible at this size (chunk several graphs per step if B grows
    # while n stays tiny).  Scaling notes: for large n, cast MXU operands (h, w_aug,
    # p, rhs) to bf16 on v6e/v7x (keep exp/where/tanh in f32; keep all elementwise math
    # f32 on v5e), and re-budget residency against v7x's 64 MiB VMEM (explicit
    # vmem_limit_bytes, flash-style (dst, src) tiling once n^2*4B nears ~16-32 MiB).
    pooled3 = pl.pallas_call(
        kernel,
        out_shape=jax.ShapeDtypeStruct((B, 1, 2 * HID), jnp.float32),
        grid=(B,),
        in_specs=[pl.BlockSpec((n, F_in0), lambda g: (g, 0)),       # this graph's nodes
                  pl.BlockSpec((1, n, n), lambda g: (g, 0, 0)),     # this graph's adj
                  pl.BlockSpec(bmask.shape, lambda g: (0, 0))]      # block-diag mask
                 + layer_specs,
        out_specs=pl.BlockSpec((1, 1, 2 * HID), lambda g: (g, 0, 0)),
        compiler_params=pltpu.CompilerParams(dimension_semantics=("parallel",)),
    )(x, adj_blocks, bmask, *layer_inputs)

    hidden = pooled3.reshape(B, 2 * HID)
    # The (B, 2*HID) @ (2*HID, 1) head is trivial; host-side avoids a <128-lane masked
    # partial store plus a second writeback DMA from the kernel.
    out = hidden @ params["wout"] + params["bout"]
    return out, hidden


# --------------------------- pure-JAX reference ----------------------------- #

def _ref_gat_layer(x, w, asrc, adst, bias, adj, heads, C):
    xw = x @ w
    outs = []
    for h in range(heads):
        xh = xw[:, h * C:(h + 1) * C]
        a_src = (xh * asrc[h]).sum(-1)
        a_dst = (xh * adst[h]).sum(-1)
        e = a_dst[:, None] + a_src[None, :]
        e = jnp.where(e > 0, e, 0.2 * e)
        e = jnp.where(adj > 0, e, -1e30)
        alpha = jax.nn.softmax(e, axis=-1)
        outs.append(alpha @ xh)
    return jnp.tanh(jnp.concatenate(outs, axis=1) + bias)


def _ref_forward(x, adj, mask, maskT, invcnt, params, heads, emb):
    h = x
    for li in range(len(params["w"])):
        h = _ref_gat_layer(h, params["w"][li], params["asrc"][li], params["adst"][li],
                           params["bias"][li], adj, heads, emb)
    mean = (mask @ h) * invcnt
    mx = jnp.stack([jnp.max(jnp.where(maskT[:, b:b + 1] > 0, h, -1e30), axis=0)
                    for b in range(mask.shape[0])], axis=0)
    pooled = jnp.concatenate([mx, mean], axis=1)
    out = pooled @ params["wout"] + params["bout"]
    return out, pooled


# ----------------------------------- main ------------------------------------ #

if __name__ == "__main__":
    # Model hyper-parameters (small, consistent with the module's __init__).
    num_features = 4
    embedding_size = 8
    heads = 2
    gnn_layers = 3
    nodes_per_graph = 8
    B = 2
    N = B * nodes_per_graph
    HID = heads * embedding_size          # per-layer output width (concat=True)

    key = jax.random.PRNGKey(0)
    keys = jax.random.split(key, 4 * gnn_layers + 3)

    # Node features.
    x = jax.random.normal(keys[0], (N, num_features), dtype=jnp.float32)

    # Deterministic graph: a bidirectional ring inside each of the B graphs.
    edges = []
    for g in range(B):
        base = g * nodes_per_graph
        for i in range(nodes_per_graph):
            j = (i + 1) % nodes_per_graph
            edges.append((base + i, base + j))
            edges.append((base + j, base + i))
    edge_index = np.array(edges, dtype=np.int32).T           # (2, E)
    batch_index = np.repeat(np.arange(B), nodes_per_graph)   # (N,)

    # Dense adjacency adj[dst, src] with self loops (GATConv add_self_loops=True) —
    # reference only.
    adj_np = np.zeros((N, N), dtype=np.float32)
    adj_np[edge_index[1], edge_index[0]] = 1.0
    np.fill_diagonal(adj_np, 1.0)
    adj = jnp.asarray(adj_np)

    # Per-graph int8 adjacency blocks for the kernel (block-diagonal structure).
    adj_blocks = jnp.asarray(np.stack(
        [adj_np[g * nodes_per_graph:(g + 1) * nodes_per_graph,
                g * nodes_per_graph:(g + 1) * nodes_per_graph]
         for g in range(B)]).astype(np.int8))

    # Graph membership masks for the reference pooling.
    mask_np = np.zeros((B, N), dtype=np.float32)
    mask_np[batch_index, np.arange(N)] = 1.0
    mask = jnp.asarray(mask_np)
    maskT = jnp.asarray(mask_np.T)
    invcnt = jnp.asarray(1.0 / mask_np.sum(axis=1, keepdims=True))

    # Deterministic parameter initialization (synthetic; no checkpoint load).
    params = {"w": [], "asrc": [], "adst": [], "bias": []}
    kidx = 1
    for li in range(gnn_layers):
        f_in = num_features if li == 0 else HID
        params["w"].append(0.3 * jax.random.normal(keys[kidx], (f_in, HID), jnp.float32))
        params["asrc"].append(0.3 * jax.random.normal(keys[kidx + 1],
                                                      (heads, embedding_size), jnp.float32))
        params["adst"].append(0.3 * jax.random.normal(keys[kidx + 2],
                                                      (heads, embedding_size), jnp.float32))
        params["bias"].append(0.1 * jax.random.normal(keys[kidx + 3], (1, HID), jnp.float32))
        kidx += 4
    params["wout"] = 0.3 * jax.random.normal(keys[kidx], (2 * HID, 1), jnp.float32)
    params["bout"] = 0.1 * jax.random.normal(keys[kidx + 1], (1, 1), jnp.float32)

    # Run the fused, per-graph-gridded Pallas implementation.
    out, hidden = gat_loop_forward(x, adj_blocks, params, heads=heads,
                                   emb=embedding_size, nodes_per_graph=nodes_per_graph)
    out = jax.block_until_ready(out)
    hidden = jax.block_until_ready(hidden)

    # Sanity-check against a pure-JAX dense reference of the same math.  Tolerances
    # absorb the mathematically-equivalent reassociations in the fused kernel (folded
    # attention projections, block-diag fused aggregation, normalize-after-aggregation)
    # plus the approx EUP reciprocal used for the softmax denominator.
    out_ref, hidden_ref = _ref_forward(x, adj, mask, maskT, invcnt, params,
                                       heads, embedding_size)
    assert out.shape == (B, 1) and hidden.shape == (B, 2 * HID)
    np.testing.assert_allclose(np.asarray(out), np.asarray(out_ref),
                               rtol=2e-3, atol=2e-3)
    np.testing.assert_allclose(np.asarray(hidden), np.asarray(hidden_ref),
                               rtol=2e-3, atol=2e-3)

    print("KERNEL_OK")
</pallas_src>

<mosaic_0001>
module attributes {stable_mosaic.version = 11 : i64} {
  func.func @gat_graph_kernel(%arg0: i32, %arg1: memref<8x4xf32, #tpu.memory_space<vmem>>, %arg2: memref<1x8x8xi8, #tpu.memory_space<vmem>>, %arg3: memref<16x16xf32, #tpu.memory_space<vmem>>, %arg4: memref<4x34xf32, #tpu.memory_space<vmem>>, %arg5: memref<1x16xf32, #tpu.memory_space<vmem>>, %arg6: memref<16x34xf32, #tpu.memory_space<vmem>>, %arg7: memref<1x16xf32, #tpu.memory_space<vmem>>, %arg8: memref<16x34xf32, #tpu.memory_space<vmem>>, %arg9: memref<1x16xf32, #tpu.memory_space<vmem>>, %arg10: memref<1x1x32xf32, #tpu.memory_space<vmem>>) attributes {dimension_semantics = [#tpu.dimension_semantics<parallel>], iteration_bounds = array<i64: 2>, scalar_prefetch = 0 : i64, scratch_operands = 0 : i64, tpu.core_type = #tpu.core_type<tc>, window_params = [{transform_indices = @transform_0, window_bounds = array<i64: 8, 4>}, {transform_indices = @transform_1, window_bounds = array<i64: 1, 8, 8>}, {pipeline_mode = #tpu.pipeline_mode<synchronous>, transform_indices = @transform_2, window_bounds = array<i64: 16, 16>}, {pipeline_mode = #tpu.pipeline_mode<synchronous>, transform_indices = @transform_3, window_bounds = array<i64: 4, 34>}, {pipeline_mode = #tpu.pipeline_mode<synchronous>, transform_indices = @transform_4, window_bounds = array<i64: 1, 16>}, {pipeline_mode = #tpu.pipeline_mode<synchronous>, transform_indices = @transform_5, window_bounds = array<i64: 16, 34>}, {pipeline_mode = #tpu.pipeline_mode<synchronous>, transform_indices = @transform_6, window_bounds = array<i64: 1, 16>}, {pipeline_mode = #tpu.pipeline_mode<synchronous>, transform_indices = @transform_7, window_bounds = array<i64: 16, 34>}, {pipeline_mode = #tpu.pipeline_mode<synchronous>, transform_indices = @transform_8, window_bounds = array<i64: 1, 16>}, {transform_indices = @transform_9, window_bounds = array<i64: 1, 1, 32>}]} {
    %c0 = arith.constant 0 : index
    %c0_0 = arith.constant 0 : index
    %c0_1 = arith.constant 0 : index
    %0 = vector.load %arg2[%c0, %c0_0, %c0_1] : memref<1x8x8xi8, #tpu.memory_space<vmem>>, vector<1x8x8xi8>
    %1 = vector.shape_cast %0 : vector<1x8x8xi8> to vector<8x8xi8>
    %2 = arith.sitofp %1 : vector<8x8xi8> to vector<8x8xf32>
    %cst = arith.constant 0.000000e+00 : f32
    %3 = vector.broadcast %cst : f32 to vector<8x8xf32>
    %4 = arith.cmpf ogt, %2, %3 : vector<8x8xf32>
    %cst_2 = arith.constant 0.000000e+00 : f32
    %cst_3 = arith.constant -1.000000e+30 : f32
    %5 = vector.broadcast %cst_2 : f32 to vector<8x8xf32>
    %6 = vector.broadcast %cst_3 : f32 to vector<8x8xf32>
    %7 = arith.select %4, %5, %6 : vector<8x8xi1>, vector<8x8xf32>
    %8 = tpu.concatenate %7, %7 in 1 : vector<8x8xf32>, vector<8x8xf32> -> vector<8x16xf32>
    %c0_4 = arith.constant 0 : index
    %c0_5 = arith.constant 0 : index
    %9 = vector.load %arg3[%c0_4, %c0_5] : memref<16x16xf32, #tpu.memory_space<vmem>>, vector<16x16xf32>
    %c0_6 = arith.constant 0 : index
    %c0_7 = arith.constant 0 : index
    %10 = vector.load %arg1[%c0_6, %c0_7] : memref<8x4xf32, #tpu.memory_space<vmem>>, vector<8x4xf32>
    %c0_8 = arith.constant 0 : index
    %c0_9 = arith.constant 0 : index
    %11 = vector.load %arg4[%c0_8, %c0_9] : memref<4x34xf32, #tpu.memory_space<vmem>>, vector<4x34xf32>
    %c0_10 = arith.constant 0 : index
    %c0_11 = arith.constant 0 : index
    %12 = vector.load %arg5[%c0_10, %c0_11] : memref<1x16xf32, #tpu.memory_space<vmem>>, vector<1x16xf32>
    %cst_12 = arith.constant dense<0.000000e+00> : vector<8x34xf32>
    %13 = tpu.matmul %10, %11, %cst_12 {dimension_numbers = #tpu.dot_dimension_numbers<[1], [0], [0], [1], [0, 0, 1, 1], [], []>} : vector<8x4xf32>, vector<4x34xf32>, vector<8x34xf32> -> vector<8x34xf32>
    %14 = vector.extract_strided_slice %13 {offsets = [0, 0], sizes = [8, 16], strides = [1, 1]} : vector<8x34xf32> to vector<8x16xf32>
    %15 = vector.extract_strided_slice %13 {offsets = [0, 16], sizes = [8, 2], strides = [1, 1]} : vector<8x34xf32> to vector<8x2xf32>
    %16 = vector.extract_strided_slice %13 {offsets = [0, 18], sizes = [8, 16], strides = [1, 1]} : vector<8x34xf32> to vector<8x16xf32>
    %17 = tpu.transpose %15, [1, 0] : vector<8x2xf32> -> vector<2x8xf32>
    %18 = vector.extract_strided_slice %17 {offsets = [0, 0], sizes = [1, 8], strides = [1, 1]} : vector<2x8xf32> to vector<1x8xf32>
    %19 = vector.extract_strided_slice %17 {offsets = [1, 0], sizes = [1, 8], strides = [1, 1]} : vector<2x8xf32> to vector<1x8xf32>
    %20 = tpu.concatenate %18, %19 in 1 : vector<1x8xf32>, vector<1x8xf32> -> vector<1x16xf32>
    %21 = vector.broadcast %20 : vector<1x16xf32> to vector<8x16xf32>
    %22 = arith.addf %16, %21 : vector<8x16xf32>
    %cst_13 = arith.constant 0.000000e+00 : f32
    %23 = vector.broadcast %cst_13 : f32 to vector<8x16xf32>
    %24 = arith.cmpf ogt, %22, %23 : vector<8x16xf32>
    %cst_14 = arith.constant 2.000000e-01 : f32
    %25 = vector.broadcast %cst_14 : f32 to vector<8x16xf32>
    %26 = arith.mulf %25, %22 : vector<8x16xf32>
    %27 = arith.select %24, %22, %26 : vector<8x16xi1>, vector<8x16xf32>
    %28 = arith.addf %27, %8 : vector<8x16xf32>
    %cst_15 = arith.constant dense<0xFF800000> : vector<8xf32>
    %29 = vector.multi_reduction <maximumf>, %28, %cst_15 [1] : vector<8x16xf32> to vector<8xf32>
    %30 = vector.shape_cast %29 : vector<8xf32> to vector<8x1xf32>
    %31 = vector.broadcast %30 : vector<8x1xf32> to vector<8x16xf32>
    %32 = arith.subf %28, %31 : vector<8x16xf32>
    %33 = math.exp %32 : vector<8x16xf32>
    %34 = tpu.concatenate %14, %14 in 0 : vector<8x16xf32>, vector<8x16xf32> -> vector<16x16xf32>
    %35 = arith.mulf %34, %9 : vector<16x16xf32>
    %36 = tpu.concatenate %35, %9 in 1 : vector<16x16xf32>, vector<16x16xf32> -> vector<16x32xf32>
    %cst_16 = arith.constant dense<0.000000e+00> : vector<8x32xf32>
    %37 = tpu.matmul %33, %36, %cst_16 {dimension_numbers = #tpu.dot_dimension_numbers<[1], [0], [0], [1], [0, 0, 1, 1], [], []>} : vector<8x16xf32>, vector<16x32xf32>, vector<8x32xf32> -> vector<8x32xf32>
    %38 = vector.extract_strided_slice %37 {offsets = [0, 0], sizes = [8, 16], strides = [1, 1]} : vector<8x32xf32> to vector<8x16xf32>
    %39 = vector.extract_strided_slice %37 {offsets = [0, 16], sizes = [8, 16], strides = [1, 1]} : vector<8x32xf32> to vector<8x16xf32>
    %40 = tpu.reciprocal %39 {approx = true} : vector<8x16xf32> -> vector<8x16xf32>
    %41 = arith.mulf %38, %40 : vector<8x16xf32>
    %42 = vector.broadcast %12 : vector<1x16xf32> to vector<8x16xf32>
    %43 = arith.addf %41, %42 : vector<8x16xf32>
    %44 = math.tanh %43 : vector<8x16xf32>
    %c0_17 = arith.constant 0 : index
    %c0_18 = arith.constant 0 : index
    %45 = vector.load %arg6[%c0_17, %c0_18] : memref<16x34xf32, #tpu.memory_space<vmem>>, vector<16x34xf32>
    %c0_19 = arith.constant 0 : index
    %c0_20 = arith.constant 0 : index
    %46 = vector.load %arg7[%c0_19, %c0_20] : memref<1x16xf32, #tpu.memory_space<vmem>>, vector<1x16xf32>
    %cst_21 = arith.constant dense<0.000000e+00> : vector<8x34xf32>
    %47 = tpu.matmul %44, %45, %cst_21 {dimension_numbers = #tpu.dot_dimension_numbers<[1], [0], [0], [1], [0, 0, 1, 1], [], []>} : vector<8x16xf32>, vector<16x34xf32>, vector<8x34xf32> -> vector<8x34xf32>
    %48 = vector.extract_strided_slice %47 {offsets = [0, 0], sizes = [8, 16], strides = [1, 1]} : vector<8x34xf32> to vector<8x16xf32>
    %49 = vector.extract_strided_slice %47 {offsets = [0, 16], sizes = [8, 2], strides = [1, 1]} : vector<8x34xf32> to vector<8x2xf32>
    %50 = vector.extract_strided_slice %47 {offsets = [0, 18], sizes = [8, 16], strides = [1, 1]} : vector<8x34xf32> to vector<8x16xf32>
    %51 = tpu.transpose %49, [1, 0] : vector<8x2xf32> -> vector<2x8xf32>
    %52 = vector.extract_strided_slice %51 {offsets = [0, 0], sizes = [1, 8], strides = [1, 1]} : vector<2x8xf32> to vector<1x8xf32>
    %53 = vector.extract_strided_slice %51 {offsets = [1, 0], sizes = [1, 8], strides = [1, 1]} : vector<2x8xf32> to vector<1x8xf32>
    %54 = tpu.concatenate %52, %53 in 1 : vector<1x8xf32>, vector<1x8xf32> -> vector<1x16xf32>
    %55 = vector.broadcast %54 : vector<1x16xf32> to vector<8x16xf32>
    %56 = arith.addf %50, %55 : vector<8x16xf32>
    %cst_22 = arith.constant 0.000000e+00 : f32
    %57 = vector.broadcast %cst_22 : f32 to vector<8x16xf32>
    %58 = arith.cmpf ogt, %56, %57 : vector<8x16xf32>
    %cst_23 = arith.constant 2.000000e-01 : f32
    %59 = vector.broadcast %cst_23 : f32 to vector<8x16xf32>
    %60 = arith.mulf %59, %56 : vector<8x16xf32>
    %61 = arith.select %58, %56, %60 : vector<8x16xi1>, vector<8x16xf32>
    %62 = arith.addf %61, %8 : vector<8x16xf32>
    %cst_24 = arith.constant dense<0xFF800000> : vector<8xf32>
    %63 = vector.multi_reduction <maximumf>, %62, %cst_24 [1] : vector<8x16xf32> to vector<8xf32>
    %64 = vector.shape_cast %63 : vector<8xf32> to vector<8x1xf32>
    %65 = vector.broadcast %64 : vector<8x1xf32> to vector<8x16xf32>
    %66 = arith.subf %62, %65 : vector<8x16xf32>
    %67 = math.exp %66 : vector<8x16xf32>
    %68 = tpu.concatenate %48, %48 in 0 : vector<8x16xf32>, vector<8x16xf32> -> vector<16x16xf32>
    %69 = arith.mulf %68, %9 : vector<16x16xf32>
    %70 = tpu.concatenate %69, %9 in 1 : vector<16x16xf32>, vector<16x16xf32> -> vector<16x32xf32>
    %cst_25 = arith.constant dense<0.000000e+00> : vector<8x32xf32>
    %71 = tpu.matmul %67, %70, %cst_25 {dimension_numbers = #tpu.dot_dimension_numbers<[1], [0], [0], [1], [0, 0, 1, 1], [], []>} : vector<8x16xf32>, vector<16x32xf32>, vector<8x32xf32> -> vector<8x32xf32>
    %72 = vector.extract_strided_slice %71 {offsets = [0, 0], sizes = [8, 16], strides = [1, 1]} : vector<8x32xf32> to vector<8x16xf32>
    %73 = vector.extract_strided_slice %71 {offsets = [0, 16], sizes = [8, 16], strides = [1, 1]} : vector<8x32xf32> to vector<8x16xf32>
    %74 = tpu.reciprocal %73 {approx = true} : vector<8x16xf32> -> vector<8x16xf32>
    %75 = arith.mulf %72, %74 : vector<8x16xf32>
    %76 = vector.broadcast %46 : vector<1x16xf32> to vector<8x16xf32>
    %77 = arith.addf %75, %76 : vector<8x16xf32>
    %78 = math.tanh %77 : vector<8x16xf32>
    %c0_26 = arith.constant 0 : index
    %c0_27 = arith.constant 0 : index
    %79 = vector.load %arg8[%c0_26, %c0_27] : memref<16x34xf32, #tpu.memory_space<vmem>>, vector<16x34xf32>
    %c0_28 = arith.constant 0 : index
    %c0_29 = arith.constant 0 : index
    %80 = vector.load %arg9[%c0_28, %c0_29] : memref<1x16xf32, #tpu.memory_space<vmem>>, vector<1x16xf32>
    %cst_30 = arith.constant dense<0.000000e+00> : vector<8x34xf32>
    %81 = tpu.matmul %78, %79, %cst_30 {dimension_numbers = #tpu.dot_dimension_numbers<[1], [0], [0], [1], [0, 0, 1, 1], [], []>} : vector<8x16xf32>, vector<16x34xf32>, vector<8x34xf32> -> vector<8x34xf32>
    %82 = vector.extract_strided_slice %81 {offsets = [0, 0], sizes = [8, 16], strides = [1, 1]} : vector<8x34xf32> to vector<8x16xf32>
    %83 = vector.extract_strided_slice %81 {offsets = [0, 16], sizes = [8, 2], strides = [1, 1]} : vector<8x34xf32> to vector<8x2xf32>
    %84 = vector.extract_strided_slice %81 {offsets = [0, 18], sizes = [8, 16], strides = [1, 1]} : vector<8x34xf32> to vector<8x16xf32>
    %85 = tpu.transpose %83, [1, 0] : vector<8x2xf32> -> vector<2x8xf32>
    %86 = vector.extract_strided_slice %85 {offsets = [0, 0], sizes = [1, 8], strides = [1, 1]} : vector<2x8xf32> to vector<1x8xf32>
    %87 = vector.extract_strided_slice %85 {offsets = [1, 0], sizes = [1, 8], strides = [1, 1]} : vector<2x8xf32> to vector<1x8xf32>
    %88 = tpu.concatenate %86, %87 in 1 : vector<1x8xf32>, vector<1x8xf32> -> vector<1x16xf32>
    %89 = vector.broadcast %88 : vector<1x16xf32> to vector<8x16xf32>
    %90 = arith.addf %84, %89 : vector<8x16xf32>
    %cst_31 = arith.constant 0.000000e+00 : f32
    %91 = vector.broadcast %cst_31 : f32 to vector<8x16xf32>
    %92 = arith.cmpf ogt, %90, %91 : vector<8x16xf32>
    %cst_32 = arith.constant 2.000000e-01 : f32
    %93 = vector.broadcast %cst_32 : f32 to vector<8x16xf32>
    %94 = arith.mulf %93, %90 : vector<8x16xf32>
    %95 = arith.select %92, %90, %94 : vector<8x16xi1>, vector<8x16xf32>
    %96 = arith.addf %95, %8 : vector<8x16xf32>
    %cst_33 = arith.constant dense<0xFF800000> : vector<8xf32>
    %97 = vector.multi_reduction <maximumf>, %96, %cst_33 [1] : vector<8x16xf32> to vector<8xf32>
    %98 = vector.shape_cast %97 : vector<8xf32> to vector<8x1xf32>
    %99 = vector.broadcast %98 : vector<8x1xf32> to vector<8x16xf32>
    %100 = arith.subf %96, %99 : vector<8x16xf32>
    %101 = math.exp %100 : vector<8x16xf32>
    %102 = tpu.concatenate %82, %82 in 0 : vector<8x16xf32>, vector<8x16xf32> -> vector<16x16xf32>
    %103 = arith.mulf %102, %9 : vector<16x16xf32>
    %104 = tpu.concatenate %103, %9 in 1 : vector<16x16xf32>, vector<16x16xf32> -> vector<16x32xf32>
    %cst_34 = arith.constant dense<0.000000e+00> : vector<8x32xf32>
    %105 = tpu.matmul %101, %104, %cst_34 {dimension_numbers = #tpu.dot_dimension_numbers<[1], [0], [0], [1], [0, 0, 1, 1], [], []>} : vector<8x16xf32>, vector<16x32xf32>, vector<8x32xf32> -> vector<8x32xf32>
    %106 = vector.extract_strided_slice %105 {offsets = [0, 0], sizes = [8, 16], strides = [1, 1]} : vector<8x32xf32> to vector<8x16xf32>
    %107 = vector.extract_strided_slice %105 {offsets = [0, 16], sizes = [8, 16], strides = [1, 1]} : vector<8x32xf32> to vector<8x16xf32>
    %108 = tpu.reciprocal %107 {approx = true} : vector<8x16xf32> -> vector<8x16xf32>
    %109 = arith.mulf %106, %108 : vector<8x16xf32>
    %110 = vector.broadcast %80 : vector<1x16xf32> to vector<8x16xf32>
    %111 = arith.addf %109, %110 : vector<8x16xf32>
    %112 = math.tanh %111 : vector<8x16xf32>
    %cst_35 = arith.constant dense<0xFF800000> : vector<16xf32>
    %113 = vector.multi_reduction <maximumf>, %112, %cst_35 [0] : vector<8x16xf32> to vector<16xf32>
    %114 = vector.shape_cast %113 : vector<16xf32> to vector<1x16xf32>
    %cst_36 = arith.constant dense<0.000000e+00> : vector<16xf32>
    %115 = vector.multi_reduction <add>, %112, %cst_36 [0] : vector<8x16xf32> to vector<16xf32>
    %116 = vector.shape_cast %115 : vector<16xf32> to vector<1x16xf32>
    %cst_37 = arith.constant 1.250000e-01 : f32
    %117 = vector.broadcast %cst_37 : f32 to vector<1x16xf32>
    %118 = arith.mulf %116, %117 : vector<1x16xf32>
    %119 = tpu.concatenate %114, %118 in 1 : vector<1x16xf32>, vector<1x16xf32> -> vector<1x32xf32>
    %c0_38 = arith.constant 0 : index
    %c0_39 = arith.constant 0 : index
    %c0_40 = arith.constant 0 : index
    %120 = vector.load %arg10[%c0_38, %c0_39, %c0_40] : memref<1x1x32xf32, #tpu.memory_space<vmem>>, vector<1x1x32xf32>
    %121 = vector.shape_cast %120 : vector<1x1x32xf32> to vector<1x32xf32>
    %122 = vector.shape_cast %119 : vector<1x32xf32> to vector<1x1x32xf32>
    tpu.vector_store %arg10[%c0_38, %c0_39, %c0_40], %122 {strides = array<i32>} : memref<1x1x32xf32, #tpu.memory_space<vmem>>, vector<1x1x32xf32>,
    return
  }
  func.func @transform_0(%arg0: i32) -> (i32, i32) {
    %c0_i32 = arith.constant 0 : i32
    %c0_i32_0 = arith.constant 0 : i32
    return %arg0, %c0_i32 : i32, i32
  }
  func.func @transform_1(%arg0: i32) -> (i32, i32, i32) {
    %c0_i32 = arith.constant 0 : i32
    %c0_i32_0 = arith.constant 0 : i32
    %c0_i32_1 = arith.constant 0 : i32
    return %arg0, %c0_i32, %c0_i32_0 : i32, i32, i32
  }
  func.func @transform_2(%arg0: i32) -> (i32, i32) {
    %c0_i32 = arith.constant 0 : i32
    %c0_i32_0 = arith.constant 0 : i32
    %c0_i32_1 = arith.constant 0 : i32
    return %c0_i32, %c0_i32_0 : i32, i32
  }
  func.func @transform_3(%arg0: i32) -> (i32, i32) {
    %c0_i32 = arith.constant 0 : i32
    %c0_i32_0 = arith.constant 0 : i32
    %c0_i32_1 = arith.constant 0 : i32
    return %c0_i32, %c0_i32_0 : i32, i32
  }
  func.func @transform_4(%arg0: i32) -> (i32, i32) {
    %c0_i32 = arith.constant 0 : i32
    %c0_i32_0 = arith.constant 0 : i32
    %c0_i32_1 = arith.constant 0 : i32
    return %c0_i32, %c0_i32_0 : i32, i32
  }
  func.func @transform_5(%arg0: i32) -> (i32, i32) {
    %c0_i32 = arith.constant 0 : i32
    %c0_i32_0 = arith.constant 0 : i32
    %c0_i32_1 = arith.constant 0 : i32
    return %c0_i32, %c0_i32_0 : i32, i32
  }
  func.func @transform_6(%arg0: i32) -> (i32, i32) {
    %c0_i32 = arith.constant 0 : i32
    %c0_i32_0 = arith.constant 0 : i32
    %c0_i32_1 = arith.constant 0 : i32
    return %c0_i32, %c0_i32_0 : i32, i32
  }
  func.func @transform_7(%arg0: i32) -> (i32, i32) {
    %c0_i32 = arith.constant 0 : i32
    %c0_i32_0 = arith.constant 0 : i32
    %c0_i32_1 = arith.constant 0 : i32
    return %c0_i32, %c0_i32_0 : i32, i32
  }
  func.func @transform_8(%arg0: i32) -> (i32, i32) {
    %c0_i32 = arith.constant 0 : i32
    %c0_i32_0 = arith.constant 0 : i32
    %c0_i32_1 = arith.constant 0 : i32
    return %c0_i32, %c0_i32_0 : i32, i32
  }
  func.func @transform_9(%arg0: i32) -> (i32, i32, i32) {
    %c0_i32 = arith.constant 0 : i32
    %c0_i32_0 = arith.constant 0 : i32
    %c0_i32_1 = arith.constant 0 : i32
    return %arg0, %c0_i32, %c0_i32_0 : i32, i32, i32
  }
}

</mosaic_0001>

<llo_original>
// kernel: tpu_custom_call.1
$region0: #{tpu_custom_call.1}
  #allocation0 [shape = 'u32[]', space=smem, size = 0x4, offset = 0x4, fixed_abs, tag = 'smem constant byte address 0x4 - core index']
  #allocation1 [shape = 'u32[144,128]{1,0:T(1,128)}', space=vmem, size = 0x12000, scoped, tag = 'internal scratch']
  %s0 = inlined_call_operand.vmem [shape: f32[16,4], index: 0, kind: input, shape index: {}]
  %s1 = inlined_call_operand.hbm [shape: s8[2,8,8], index: 1, kind: input, shape index: {}]
  %s2 = inlined_call_operand.vmem [shape: f32[16,16], index: 2, kind: input, shape index: {}]
  %s3 = inlined_call_operand.hbm [shape: f32[4,34], index: 3, kind: input, shape index: {}]
  %s4 = inlined_call_operand.hbm [shape: f32[1,16], index: 4, kind: input, shape index: {}]
  %s5 = inlined_call_operand.hbm [shape: f32[16,34], index: 5, kind: input, shape index: {}]
  %s6 = inlined_call_operand.hbm [shape: f32[1,16], index: 6, kind: input, shape index: {}]
  %s7 = inlined_call_operand.vmem [shape: f32[16,34], index: 7, kind: input, shape index: {}]
  %s8 = inlined_call_operand.vmem [shape: f32[1,16], index: 8, kind: input, shape index: {}]
  %s9 = inlined_call_operand.hbm [shape: f32[2,1,32], index: 9, kind: output, shape index: {}]
  %s10 = sld [smem:[#allocation0]]
  $region89: #{tpu_custom_call.1} parent=0
    _
  %s12 = ssub.s32 1, %s10
  %s13 = scalar_select 0, %s12, %s10
  $region1: #{tpu_custom_call.1} parent=0
    #allocation2 [shape = 'u8[2048]{0}', space=vmem, size = 0x800, scoped, tag = 'input window, operand 1']
    #allocation3 [shape = 's32[2]{0}', space=sflag, size = 0x8, scoped, tag = 'scoped memory for tpu_custom_call.1']
    #allocation4 [shape = 's32[2]{0}', space=sflag, size = 0x8, scoped, tag = 'scoped memory for tpu_custom_call.1']
    #allocation5 [shape = 'u8[2048]{0}', space=vmem, size = 0x800, scoped, tag = 'input window, operand 3, single buffered']
    #allocation6 [shape = 's32[1]{0}', space=sflag, size = 0x4, scoped, tag = 'scoped memory for tpu_custom_call.1']
    #allocation7 [shape = 'u8[512]{0}', space=vmem, size = 0x400, scoped, tag = 'input window, operand 4, single buffered']
    #allocation8 [shape = 'u8[8192]{0}', space=vmem, size = 0x2000, scoped, tag = 'input window, operand 5, single buffered']
    #allocation9 [shape = 's32[1]{0}', space=sflag, size = 0x4, scoped, tag = 'scoped memory for tpu_custom_call.1']
    #allocation10 [shape = 'u8[512]{0}', space=vmem, size = 0x400, scoped, tag = 'input window, operand 6, single buffered']
    #allocation11 [shape = 'u8[1024]{0}', space=vmem, size = 0x400, scoped, tag = 'output window, operand 0']
    %14 = vsyncpa [#allocation3], 0
    %s15 = scalar_lea.sflag [#allocation3], 1
    %16 = vsyncpa %s15, 0
    %17 = vsyncpa [#allocation6], 0
    %18 = vsyncpa [#allocation9], 0
    %19 = vsyncpa [#allocation4], 0
    %s20 = scalar_lea.sflag [#allocation4], 1
    %21 = vsyncpa %s20, 0
    loop: start=0, step=1, limit=4
    $region2: #{tpu_custom_call.1} parent=1 // loop_pre_header
      _
    $region3: #{tpu_custom_call.1} parent=1 // loop_header
      %s23 = sphi 0, %s27
      %p24 = scmp.ge.s32.totalorder %s23, 4
      %s33 = sphi 0, %s35
      %s36 = sphi 0, %s33
      %s37 = sphi 0, %s36
      %s53 = sphi 0, %s37
      %s59 = sphi 0, %s61
      %s62 = sphi 0, %s59
      %s63 = sphi 0, %s62
      %s79 = sphi 0, %s63
      %s83 = sphi 0, %s83
      %s85 = sphi 0, %s83
      %s86 = sphi 0, %s85
      %s100 = sphi 0, %s86
      %s104 = sphi 0, %s104
      %s106 = sphi 0, %s104
      %s107 = sphi 0, %s106
      %s121 = sphi 0, %s107
      %s125 = sphi 0, %s125
      %s127 = sphi 0, %s125
      %s128 = sphi 0, %s127
      %s142 = sphi 0, %s128
      %s146 = sphi 0, %s146
      %s148 = sphi 0, %s146
      %s149 = sphi 0, %s148
      %s163 = sphi 0, %s149
      %s167 = sphi 0, %s167
      %s169 = sphi 0, %s167
      %s170 = sphi 0, %s169
      %s184 = sphi 0, %s170
      %s188 = sphi 0, %s188
      %s190 = sphi 0, %s188
      %s191 = sphi 0, %s190
      %s205 = sphi 0, %s191
      %s209 = sphi 0, %s209
      %s211 = sphi 0, %s209
      %s212 = sphi 0, %s211
      %s226 = sphi 0, %s212
      %s232 = sphi 0, %s234
      %s235 = sphi 0, %s232
      %s236 = sphi 0, %s235
      %s252 = sphi 0, %s236
    $region4: #{tpu_custom_call.1} parent=1 // loop_header_branch
      %26 = sbr.rel (%p24) target = $region8
    $region5: #{tpu_custom_call.1} parent=1 // loop_body
      %s28 = ssub.s32 %s23, 1
      %s29 = ssub.s32 %s23, 2
      %s30 = sadd.s32 %s23, 1
      %s31 = ssub.s32 %s23, %s30
      %p32 = scmp.eq.s32.totalorder %s31, 0
      %s34 = sadd.s32 %s33, 1
      %s35 = scalar_select %p32, %s33, %s34
      %p38 = pneg %p32
      %p39 = scmp.eq.s32.totalorder %s23, 1
      %p40 = por %p38, %p39
      %p41 = scmp.ne.s32.totalorder %s33, %s36
      %p42 = scmp.eq.s32.totalorder %s23, 0
      %p43 = por %p41, %p42
      %p44 = scmp.ne.s32.totalorder %s33, %s36
      %p45 = scmp.eq.s32.totalorder %s28, 1
      %p46 = por %p44, %p45
      %p47 = scmp.ne.s32.totalorder %s36, %s37
      %p48 = scmp.eq.s32.totalorder %s28, 0
      %p49 = por %p47, %p48
      %p50 = scmp.ne.s32.totalorder %s36, %s37
      %p51 = scmp.eq.s32.totalorder %s29, 1
      %p52 = por %p50, %p51
      %p54 = scmp.ne.s32.totalorder %s37, %s53
      %p55 = scmp.eq.s32.totalorder %s29, 0
      %p56 = por %p54, %p55
      %s57 = ssub.s32 %s23, %s30
      %p58 = scmp.eq.s32.totalorder %s57, 0
      %s60 = sadd.s32 %s59, 1
      %s61 = scalar_select %p58, %s59, %s60
      %p64 = pneg %p58
      %p65 = scmp.eq.s32.totalorder %s23, 1
      %p66 = por %p64, %p65
      %p67 = scmp.ne.s32.totalorder %s59, %s62
      %p68 = scmp.eq.s32.totalorder %s23, 0
      %p69 = por %p67, %p68
      %p70 = scmp.ne.s32.totalorder %s59, %s62
      %p71 = scmp.eq.s32.totalorder %s28, 1
      %p72 = por %p70, %p71
      %p73 = scmp.ne.s32.totalorder %s62, %s63
      %p74 = scmp.eq.s32.totalorder %s28, 0
      %p75 = por %p73, %p74
      %p76 = scmp.ne.s32.totalorder %s62, %s63
      %p77 = scmp.eq.s32.totalorder %s29, 1
      %p78 = por %p76, %p77
      %p80 = scmp.ne.s32.totalorder %s63, %s79
      %p81 = scmp.eq.s32.totalorder %s29, 0
      %p82 = por %p80, %p81
      %s84 = sadd.s32 %s83, 1
      %p87 = scmp.eq.s32.totalorder %s23, 1
      %p88 = scmp.ne.s32.totalorder %s83, %s85
      %p89 = scmp.eq.s32.totalorder %s23, 0
      %p90 = por %p88, %p89
      %p91 = scmp.ne.s32.totalorder %s83, %s85
      %p92 = scmp.eq.s32.totalorder %s28, 1
      %p93 = por %p91, %p92
      %p94 = scmp.ne.s32.totalorder %s85, %s86
      %p95 = scmp.eq.s32.totalorder %s28, 0
      %p96 = por %p94, %p95
      %p97 = scmp.ne.s32.totalorder %s85, %s86
      %p98 = scmp.eq.s32.totalorder %s29, 1
      %p99 = por %p97, %p98
      %p101 = scmp.ne.s32.totalorder %s86, %s100
      %p102 = scmp.eq.s32.totalorder %s29, 0
      %p103 = por %p101, %p102
      %s105 = sadd.s32 %s104, 1
      %p108 = scmp.eq.s32.totalorder %s23, 1
      %p109 = scmp.ne.s32.totalorder %s104, %s106
      %p110 = scmp.eq.s32.totalorder %s23, 0
      %p111 = por %p109, %p110
      %p112 = scmp.ne.s32.totalorder %s104, %s106
      %p113 = scmp.eq.s32.totalorder %s28, 1
      %p114 = por %p112, %p113
      %p115 = scmp.ne.s32.totalorder %s106, %s107
      %p116 = scmp.eq.s32.totalorder %s28, 0
      %p117 = por %p115, %p116
      %p118 = scmp.ne.s32.totalorder %s106, %s107
      %p119 = scmp.eq.s32.totalorder %s29, 1
      %p120 = por %p118, %p119
      %p122 = scmp.ne.s32.totalorder %s107, %s121
      %p123 = scmp.eq.s32.totalorder %s29, 0
      %p124 = por %p122, %p123
      %s126 = sadd.s32 %s125, 1
      %p129 = scmp.eq.s32.totalorder %s23, 1
      %p130 = scmp.ne.s32.totalorder %s125, %s127
      %p131 = scmp.eq.s32.totalorder %s23, 0
      %p132 = por %p130, %p131
      %p133 = scmp.ne.s32.totalorder %s125, %s127
      %p134 = scmp.eq.s32.totalorder %s28, 1
      %p135 = por %p133, %p134
      %p136 = scmp.ne.s32.totalorder %s127, %s128
      %p137 = scmp.eq.s32.totalorder %s28, 0
      %p138 = por %p136, %p137
      %p139 = scmp.ne.s32.totalorder %s127, %s128
      %p140 = scmp.eq.s32.totalorder %s29, 1
      %p141 = por %p139, %p140
      %p143 = scmp.ne.s32.totalorder %s128, %s142
      %p144 = scmp.eq.s32.totalorder %s29, 0
      %p145 = por %p143, %p144
      %s147 = sadd.s32 %s146, 1
      %p150 = scmp.eq.s32.totalorder %s23, 1
      %p151 = scmp.ne.s32.totalorder %s146, %s148
      %p152 = scmp.eq.s32.totalorder %s23, 0
      %p153 = por %p151, %p152
      %p154 = scmp.ne.s32.totalorder %s146, %s148
      %p155 = scmp.eq.s32.totalorder %s28, 1
      %p156 = por %p154, %p155
      %p157 = scmp.ne.s32.totalorder %s148, %s149
      %p158 = scmp.eq.s32.totalorder %s28, 0
      %p159 = por %p157, %p158
      %p160 = scmp.ne.s32.totalorder %s148, %s149
      %p161 = scmp.eq.s32.totalorder %s29, 1
      %p162 = por %p160, %p161
      %p164 = scmp.ne.s32.totalorder %s149, %s163
      %p165 = scmp.eq.s32.totalorder %s29, 0
      %p166 = por %p164, %p165
      %s168 = sadd.s32 %s167, 1
      %p171 = scmp.eq.s32.totalorder %s23, 1
      %p172 = scmp.ne.s32.totalorder %s167, %s169
      %p173 = scmp.eq.s32.totalorder %s23, 0
      %p174 = por %p172, %p173
      %p175 = scmp.ne.s32.totalorder %s167, %s169
      %p176 = scmp.eq.s32.totalorder %s28, 1
      %p177 = por %p175, %p176
      %p178 = scmp.ne.s32.totalorder %s169, %s170
      %p179 = scmp.eq.s32.totalorder %s28, 0
      %p180 = por %p178, %p179
      %p181 = scmp.ne.s32.totalorder %s169, %s170
      %p182 = scmp.eq.s32.totalorder %s29, 1
      %p183 = por %p181, %p182
      %p185 = scmp.ne.s32.totalorder %s170, %s184
      %p186 = scmp.eq.s32.totalorder %s29, 0
      %p187 = por %p185, %p186
      %s189 = sadd.s32 %s188, 1
      %p192 = scmp.eq.s32.totalorder %s23, 1
      %p193 = scmp.ne.s32.totalorder %s188, %s190
      %p194 = scmp.eq.s32.totalorder %s23, 0
      %p195 = por %p193, %p194
      %p196 = scmp.ne.s32.totalorder %s188, %s190
      %p197 = scmp.eq.s32.totalorder %s28, 1
      %p198 = por %p196, %p197
      %p199 = scmp.ne.s32.totalorder %s190, %s191
      %p200 = scmp.eq.s32.totalorder %s28, 0
      %p201 = por %p199, %p200
      %p202 = scmp.ne.s32.totalorder %s190, %s191
      %p203 = scmp.eq.s32.totalorder %s29, 1
      %p204 = por %p202, %p203
      %p206 = scmp.ne.s32.totalorder %s191, %s205
      %p207 = scmp.eq.s32.totalorder %s29, 0
      %p208 = por %p206, %p207
      %s210 = sadd.s32 %s209, 1
      %p213 = scmp.eq.s32.totalorder %s23, 1
      %p214 = scmp.ne.s32.totalorder %s209, %s211
      %p215 = scmp.eq.s32.totalorder %s23, 0
      %p216 = por %p214, %p215
      %p217 = scmp.ne.s32.totalorder %s209, %s211
      %p218 = scmp.eq.s32.totalorder %s28, 1
      %p219 = por %p217, %p218
      %p220 = scmp.ne.s32.totalorder %s211, %s212
      %p221 = scmp.eq.s32.totalorder %s28, 0
      %p222 = por %p220, %p221
      %p223 = scmp.ne.s32.totalorder %s211, %s212
      %p224 = scmp.eq.s32.totalorder %s29, 1
      %p225 = por %p223, %p224
      %p227 = scmp.ne.s32.totalorder %s212, %s226
      %p228 = scmp.eq.s32.totalorder %s29, 0
      %p229 = por %p227, %p228
      %s230 = ssub.s32 %s23, %s30
      %p231 = scmp.eq.s32.totalorder %s230, 0
      %s233 = sadd.s32 %s232, 1
      %s234 = scalar_select %p231, %s232, %s233
      %p237 = pneg %p231
      %p238 = scmp.eq.s32.totalorder %s23, 1
      %p239 = por %p237, %p238
      %p240 = scmp.ne.s32.totalorder %s232, %s235
      %p241 = scmp.eq.s32.totalorder %s23, 0
      %p242 = por %p240, %p241
      %p243 = scmp.ne.s32.totalorder %s232, %s235
      %p244 = scmp.eq.s32.totalorder %s28, 1
      %p245 = por %p243, %p244
      %p246 = scmp.ne.s32.totalorder %s235, %s236
      %p247 = scmp.eq.s32.totalorder %s28, 0
      %p248 = por %p246, %p247
      %p249 = scmp.ne.s32.totalorder %s235, %s236
      %p250 = scmp.eq.s32.totalorder %s29, 1
      %p251 = por %p249, %p250
      %p253 = scmp.ne.s32.totalorder %s236, %s252
      %p254 = scmp.eq.s32.totalorder %s29, 0
      %p255 = por %p253, %p254
      %p256 = scmp.le.s32.totalorder 1, %s23
      %p257 = scmp.lt.s32.totalorder %s23, 3
      %p258 = pnand %p256, %p257
      %p259 = pneg %p258
      // Predicated region
      $region9: #{tpu_custom_call.1} parent=5 // pred_check
        _
      $region10: #{tpu_custom_call.1} parent=5 // pred_check_branch
        %261 = sbr.rel (%p258) target = $region12
      $region11: #{tpu_custom_call.1} parent=5 // pred_region
        %s262 = ssub.s32 %s23, 1
        // Predicated region
        $region13: #{tpu_custom_call.1} parent=11 // pred_check
          %p263 = pneg %p96
        $region14: #{tpu_custom_call.1} parent=11 // pred_check_branch
          %265 = sbr.rel (%p263) target = $region16
        $region15: #{tpu_custom_call.1} parent=11 // pred_region
          _
        $region16: #{tpu_custom_call.1} parent=11 // pred_fallthru
          _
        // Predicated region
        $region17: #{tpu_custom_call.1} parent=11 // pred_check
          %p266 = pneg %p117
        $region18: #{tpu_custom_call.1} parent=11 // pred_check_branch
          %268 = sbr.rel (%p266) target = $region20
        $region19: #{tpu_custom_call.1} parent=11 // pred_region
          %s270 = ssub.s32 64, 64
          %271 = vsyncadd [#allocation6], %s270
          %s273 = sshll.u32 [#allocation5], 4
          %s274 = int_to_ptr.vmem [resolvable:$true] %s273
          %276 = dma.hbm_to_vmem [thread:$0]  %s3, 64, %s274, [#allocation6]
        $region20: #{tpu_custom_call.1} parent=11 // pred_fallthru
          _
        // Predicated region
        $region21: #{tpu_custom_call.1} parent=11 // pred_check
          %p277 = pneg %p138
        $region22: #{tpu_custom_call.1} parent=11 // pred_check_branch
          %279 = sbr.rel (%p277) target = $region24
        $region23: #{tpu_custom_call.1} parent=11 // pred_region
          %s281 = ssub.s32 16, 16
          %282 = vsyncadd [#allocation6], %s281
          %s284 = sshll.u32 [#allocation7], 4
          %s285 = int_to_ptr.vmem [resolvable:$true] %s284
          %287 = dma.hbm_to_vmem [thread:$0]  %s4, 16, %s285, [#allocation6]
        $region24: #{tpu_custom_call.1} parent=11 // pred_fallthru
          _
        // Predicated region
        $region25: #{tpu_custom_call.1} parent=11 // pred_check
          %p288 = pneg %p159
        $region26: #{tpu_custom_call.1} parent=11 // pred_check_branch
          %290 = sbr.rel (%p288) target = $region28
        $region27: #{tpu_custom_call.1} parent=11 // pred_region
          %s292 = ssub.s32 256, 256
          %293 = vsyncadd [#allocation9], %s292
          %s294 = sshll.u32 [#allocation8], 4
          %s295 = int_to_ptr.vmem [resolvable:$true] %s294
          %300 = dma.hbm_to_vmem [thread:$0]  %s5, 256, %s295, [#allocation9], 128, 128, 8
        $region28: #{tpu_custom_call.1} parent=11 // pred_fallthru
          _
        // Predicated region
        $region29: #{tpu_custom_call.1} parent=11 // pred_check
          %p301 = pneg %p180
        $region30: #{tpu_custom_call.1} parent=11 // pred_check_branch
          %303 = sbr.rel (%p301) target = $region32
        $region31: #{tpu_custom_call.1} parent=11 // pred_region
          %s305 = ssub.s32 16, 16
          %306 = vsyncadd [#allocation9], %s305
          %s308 = sshll.u32 [#allocation10], 4
          %s309 = int_to_ptr.vmem [resolvable:$true] %s308
          %311 = dma.hbm_to_vmem [thread:$0]  %s6, 16, %s309, [#allocation9]
        $region32: #{tpu_custom_call.1} parent=11 // pred_fallthru
          _
        // Predicated region
        $region33: #{tpu_custom_call.1} parent=11 // pred_check
          %p312 = pneg %p201
        $region34: #{tpu_custom_call.1} parent=11 // pred_check_branch
          %314 = sbr.rel (%p312) target = $region36
        $region35: #{tpu_custom_call.1} parent=11 // pred_region
          _
        $region36: #{tpu_custom_call.1} parent=11 // pred_fallthru
          _
        // Predicated region
        $region37: #{tpu_custom_call.1} parent=11 // pred_check
          %p315 = pneg %p222
        $region38: #{tpu_custom_call.1} parent=11 // pred_check_branch
          %317 = sbr.rel (%p315) target = $region40
        $region39: #{tpu_custom_call.1} parent=11 // pred_region
          _
        $region40: #{tpu_custom_call.1} parent=11 // pred_fallthru
          _
      $region12: #{tpu_custom_call.1} parent=5 // pred_fallthru
        _
      %p318 = scmp.lt.s32.totalorder %s23, 2
      // Predicated region
      $region41: #{tpu_custom_call.1} parent=5 // pred_check
        %p319 = pneg %p318
      $region42: #{tpu_custom_call.1} parent=5 // pred_check_branch
        %321 = sbr.rel (%p319) target = $region44
      $region43: #{tpu_custom_call.1} parent=5 // pred_region
        // Predicated region
        $region45: #{tpu_custom_call.1} parent=43 // pred_check
          %p322 = pneg %p43
        $region46: #{tpu_custom_call.1} parent=43 // pred_check_branch
          %324 = sbr.rel (%p322) target = $region48
        $region47: #{tpu_custom_call.1} parent=43 // pred_region
          %p325 = scmp.lt.s32.totalorder %s23, 1
          %s326 = scalar_select %p325, %s23, 1
          %s327 = smul.addr %s326, 8
          %s328 = scalar_lea.vmem %s0, %s327
        $region48: #{tpu_custom_call.1} parent=43 // pred_fallthru
          _
        // Predicated region
        $region49: #{tpu_custom_call.1} parent=43 // pred_check
          %p329 = pneg %p69
        $region50: #{tpu_custom_call.1} parent=43 // pred_check_branch
          %331 = sbr.rel (%p329) target = $region52
        $region51: #{tpu_custom_call.1} parent=43 // pred_region
          %s332 = sand.u32 %s59, 1
          %s333 = scalar_lea.sflag [#allocation3], %s332
          %s334 = sand.u32 %s59, 1
          %s335 = smul.addr %s334, 2
          %s336 = scalar_lea.vmem [#allocation2], %s335
          %s338 = ssub.s32 32, 32
          %339 = vsyncadd %s333, %s338
          %s340 = smul.addr %s23, 32
          %s341 = scalar_lea.hbm %s1, %s340
          %s343 = sshll.u32 %s336, 4
          %s344 = int_to_ptr.vmem [resolvable:$true] %s343
          %346 = dma.hbm_to_vmem [thread:$0]  %s341, 32, %s344, %s333
        $region52: #{tpu_custom_call.1} parent=43 // pred_fallthru
          _
      $region44: #{tpu_custom_call.1} parent=5 // pred_fallthru
        _
      %p347 = scmp.le.s32.totalorder 1, %s23
      %p348 = scmp.lt.s32.totalorder %s23, 3
      %p349 = pnand %p347, %p348
      %p350 = pneg %p349
      // Predicated region
      $region53: #{tpu_custom_call.1} parent=5 // pred_check
        _
      $region54: #{tpu_custom_call.1} parent=5 // pred_check_branch
        %352 = sbr.rel (%p349) target = $region56
      $region55: #{tpu_custom_call.1} parent=5 // pred_region
        %s353 = ssub.s32 %s23, 1
        %s354 = sand.u32 %s62, 1
        %s355 = scalar_lea.sflag [#allocation3], %s354
        %s356 = sand.u32 %s62, 1
        %s357 = smul.addr %s356, 2
        %s358 = scalar_lea.vmem [#allocation2], %s357
        // Predicated region
        $region57: #{tpu_custom_call.1} parent=55 // pred_check
          %p359 = pneg %p75
        $region58: #{tpu_custom_call.1} parent=55 // pred_check_branch
          %361 = sbr.rel (%p359) target = $region60
        $region59: #{tpu_custom_call.1} parent=55 // pred_region
          %362 = dma.done %s355, 32
        $region60: #{tpu_custom_call.1} parent=55 // pred_fallthru
          _
        // Predicated region
        $region61: #{tpu_custom_call.1} parent=55 // pred_check
          %p363 = pneg %p117
        $region62: #{tpu_custom_call.1} parent=55 // pred_check_branch
          %365 = sbr.rel (%p363) target = $region64
        $region63: #{tpu_custom_call.1} parent=55 // pred_region
          %366 = dma.done [#allocation6], 64
        $region64: #{tpu_custom_call.1} parent=55 // pred_fallthru
          _
        // Predicated region
        $region65: #{tpu_custom_call.1} parent=55 // pred_check
          %p367 = pneg %p138
        $region66: #{tpu_custom_call.1} parent=55 // pred_check_branch
          %369 = sbr.rel (%p367) target = $region68
        $region67: #{tpu_custom_call.1} parent=55 // pred_region
          %370 = dma.done [#allocation6], 16
        $region68: #{tpu_custom_call.1} parent=55 // pred_fallthru
          _
        // Predicated region
        $region69: #{tpu_custom_call.1} parent=55 // pred_check
          %p371 = pneg %p159
        $region70: #{tpu_custom_call.1} parent=55 // pred_check_branch
          %373 = sbr.rel (%p371) target = $region72
        $region71: #{tpu_custom_call.1} parent=55 // pred_region
          %374 = dma.done [#allocation9], 256
        $region72: #{tpu_custom_call.1} parent=55 // pred_fallthru
          _
        // Predicated region
        $region73: #{tpu_custom_call.1} parent=55 // pred_check
          %p375 = pneg %p180
        $region74: #{tpu_custom_call.1} parent=55 // pred_check_branch
          %377 = sbr.rel (%p375) target = $region76
        $region75: #{tpu_custom_call.1} parent=55 // pred_region
          %378 = dma.done [#allocation9], 16
        $region76: #{tpu_custom_call.1} parent=55 // pred_fallthru
          _
        %p379 = scmp.lt.s32.totalorder %s28, 1
        %s380 = scalar_select %p379, %s28, 1
        %s381 = smul.addr %s380, 8
        %s382 = scalar_lea.vmem %s0, %s381
        %p383 = pneg %p49
        %p384 = pneg %p46
        %s385 = sand.u32 %s62, 1
        %s386 = scalar_lea.sflag [#allocation3], %s385
        %s387 = sand.u32 %s62, 1
        %s388 = smul.addr %s387, 2
        %s389 = scalar_lea.vmem [#allocation2], %s388
        %p390 = pneg %p75
        %p391 = pneg %p72
        %p392 = pneg %p96
        %p393 = pneg %p93
        %p394 = pneg %p117
        %p395 = pneg %p114
        %p396 = pneg %p138
        %p397 = pneg %p135
        %p398 = pneg %p159
        %p399 = pneg %p156
        %p400 = pneg %p180
        %p401 = pneg %p177
        %p402 = pneg %p201
        %p403 = pneg %p198
        %p404 = pneg %p222
        %p405 = pneg %p219
        %p406 = pneg %p248
        %p407 = pneg %p245
        %s408 = sand.u32 %s235, 1
        %s409 = scalar_lea.sflag [#allocation4], %s408
        %s410 = sand.u32 %s235, 1
        %s411 = scalar_lea.vmem [#allocation11], %s410
        %p412 = scmp.lt.s32.totalorder %s28, 1
        %s413 = scalar_select %p412, %s28, 1
        %s414 = smul.addr %s413, 8
        %s415 = scalar_lea.vmem %s0, %s414
        %v416 = vld [vmem:[%s358] sm:$0x3]
        %v417 = vunpack.c.0.s8 %v416
        %v418 = vcvt.s32.f32 %v417
        %vm419 = vcmp.gt.f32.partialorder %v418, 0.0
        %v420 = vsel %vm419, 0.0, -1e+30
        %422 = vrot.lane.b32.xlu0 %v420, 8
        %v423 = vpop.permute.xlu0 %422
        %vm425 = vcmask 64512
        %v426 = vsel %vm425, %v420, %v423
        %v427 = vld [vmem:[%s2] sm:$0xff]
        %v428 = vld [vmem:[%s2 + $0x8] sm:$0xff]
        %v429 = vld [vmem:[%s415] sm:$0xff]
        %v430 = vld [vmem:[#allocation5] sm:$0xf]
        %v431 = vld [vmem:[#allocation7] sm:$0x1]
        %vm432 = vcmask 31744
        %v434 = vsel %vm432, %v429, 0
        %vm436 = vcmask 1043456
        %v438 = vsel %vm436, %v430, 0
        %440 = vmatprep.subr.mxu0 0.0
        %441 = vmatpush1.msra.mxu0 0.0
        %442 = vmatprep.subr.mxu0 0.0
        %443 = vmatpush1.msra.mxu0 0.0
        %444 = vmatprep.subr.mxu0 0.0
        %445 = vmatpush1.msra.mxu0 0.0
        %446 = vmatprep.subr.mxu0 0.0
        %447 = vmatpush1.msra.mxu0 0.0
        %448 = vmatprep.subr.mxu0 0.0
        %449 = vmatpush1.msra.mxu0 0.0
        %450 = vmatprep.subr.mxu0 0.0
        %451 = vmatpush1.msra.mxu0 0.0
        %452 = vmatprep.subr.mxu0 0.0
        %453 = vmatpush1.msra.mxu0 0.0
        %454 = vmatprep.subr.mxu0 0.0
        %455 = vmatpush1.msra.mxu0 0.0
        %456 = vmatprep.subr.mxu0 0.0
        %457 = vmatpush1.msra.mxu0 0.0
        %458 = vmatprep.subr.mxu0 0.0
        %459 = vmatpush1.msra.mxu0 0.0
        %460 = vmatprep.subr.mxu0 0.0
        %461 = vmatpush1.msra.mxu0 0.0
        %462 = vmatprep.subr.mxu0 0.0
        %463 = vmatpush1.msra.mxu0 0.0
        %464 = vmatprep.subr.mxu0 0.0
        %465 = vmatpush1.msra.mxu0 0.0
        %466 = vmatprep.subr.mxu0 0.0
        %467 = vmatpush1.msra.mxu0 0.0
        %468 = vmatprep.subr.mxu0 0.0
        %469 = vmatpush1.msra.mxu0 0.0
        %470 = vmatprep.subr.mxu0 0.0
        %471 = vmatpush1.msra.mxu0 %v438
        %472 = vmatprep.subr.mxu0 0.0
        %473 = vmatpush2.msra.mxu0 0.0
        %474 = vmatprep.subr.mxu0 0.0
        %475 = vmatpush2.msra.mxu0 0.0
        %476 = vmatprep.subr.mxu0 0.0
        %477 = vmatpush2.msra.mxu0 0.0
        %478 = vmatprep.subr.mxu0 0.0
        %479 = vmatpush2.msra.mxu0 0.0
        %480 = vmatprep.subr.mxu0 0.0
        %481 = vmatpush2.msra.mxu0 0.0
        %482 = vmatprep.subr.mxu0 0.0
        %483 = vmatpush2.msra.mxu0 0.0
        %484 = vmatprep.subr.mxu0 0.0
        %485 = vmatpush2.msra.mxu0 0.0
        %486 = vmatprep.subr.mxu0 0.0
        %487 = vmatpush2.msra.mxu0 0.0
        %488 = vmatprep.subr.mxu0 0.0
        %489 = vmatpush2.msra.mxu0 0.0
        %490 = vmatprep.subr.mxu0 0.0
        %491 = vmatpush2.msra.mxu0 0.0
        %492 = vmatprep.subr.mxu0 0.0
        %493 = vmatpush2.msra.mxu0 0.0
        %494 = vmatprep.subr.mxu0 0.0
        %495 = vmatpush2.msra.mxu0 0.0
        %496 = vmatprep.subr.mxu0 0.0
        %497 = vmatpush2.msra.mxu0 0.0
        %498 = vmatprep.subr.mxu0 0.0
        %499 = vmatpush2.msra.mxu0 0.0
        %500 = vmatprep.subr.mxu0 0.0
        %501 = vmatpush2.msra.mxu0 0.0
        %502 = vmatprep.subr.mxu0 0.0
        %503 = vmatpush2.msra.mxu0 0.0
        %504 = vmatprep.mubr.f32.mxu0 0.0
        %505 = vmatmul.mubr.f32.gmra.mxu0 %v434
        %v506 = vpop.f32.mrf.mxu0
        %v507 = vadd.f32 0.0, %v506
        %v508 = vpop.f32.mrf.mxu0
        %509 = vdwg.mxu0
        %511 = vrot.lane.b32.xlu0 %v507, 112
        %v512 = vpop.permute.xlu0 %511
        %514 = vxpose.xlu0.b32.start [1/16] %v512, 128
        %515 = vxpose.xlu0.b32.cont [2/16] 0.0, 128
        %516 = vxpose.xlu0.b32.cont [3/16] 0.0, 128
        %517 = vxpose.xlu0.b32.cont [4/16] 0.0, 128
        %518 = vxpose.xlu0.b32.cont [5/16] 0.0, 128
        %519 = vxpose.xlu0.b32.cont [6/16] 0.0, 128
        %520 = vxpose.xlu0.b32.cont [7/16] 0.0, 128
        %521 = vxpose.xlu0.b32.cont [8/16] 0.0, 128
        %522 = vxpose.xlu0.b32.cont [9/16] 0.0, 128
        %523 = vxpose.xlu0.b32.cont [10/16] 0.0, 128
        %524 = vxpose.xlu0.b32.cont [11/16] 0.0, 128
        %525 = vxpose.xlu0.b32.cont [12/16] 0.0, 128
        %526 = vxpose.xlu0.b32.cont [13/16] 0.0, 128
        %527 = vxpose.xlu0.b32.cont [14/16] 0.0, 128
        %528 = vxpose.xlu0.b32.cont [15/16] 0.0, 128
        %529 = vxpose.xlu0.b32.end [16/16] 0.0, 128
        %v530 = vpop.trf.xlu0
        %v531 = vpop.trf.xlu0
        %v532 = vpop.trf.xlu0
        %v533 = vpop.trf.xlu0
        %v534 = vpop.trf.xlu0
        %v535 = vpop.trf.xlu0
        %v536 = vpop.trf.xlu0
        %v537 = vpop.trf.xlu0
        %v538 = vpop.trf.xlu0
        %v539 = vpop.trf.xlu0
        %v540 = vpop.trf.xlu0
        %v541 = vpop.trf.xlu0
        %v542 = vpop.trf.xlu0
        %v543 = vpop.trf.xlu0
        %v544 = vpop.trf.xlu0
        %v545 = vpop.trf.xlu0
        %v547 = vrot.slane %v530, 1
        %548 = vrot.lane.b32.xlu0 %v547, 8
        %v549 = vpop.permute.xlu0 %548
        %v551 = vsel %vm425, %v530, %v549
        %v552 = vlaneseq
        %v553 = vshrl.u32 %v552, 7
        %v554 = vsub.s32 0, %v553
        %v555 = vrot.slane %v551, %v554
        %557 = vrot.lane.b32.xlu0 %v555, 18
        %v558 = vpop.permute.xlu0 %557
        %v560 = vadd.f32 %v507, %v558
        %vm561 = vcmp.gt.f32.partialorder %v560, 0.0
        %v562 = vmul.f32 %v560, 0.2
        %v563 = vsel %vm561, %v560, %v562
        %565 = vrot.lane.b32.xlu0 %v426, 18
        %v566 = vpop.permute.xlu0 %565
        %v568 = vadd.f32 %v563, %v566
        %vm569 = vcmask 277648
        %v570 = vsel %vm569, %v568, -inf
        %571 = vmax.xlane.f32.xlu0 %v570
        %v572 = vpop.xlane.xlu0 %571
        %v573 = vsub.f32 %v568, %v572
        %v574 = vmul.f32 %v573, 1.442695
        %v575 = vpow.pop %v574
        %v576 = vmul.f32 %v507, %v427
        %v577 = vmul.f32 %v507, %v428
        %580 = vrot.lane.b32.xlu0 %v427, 16
        %v581 = vpop.permute.xlu0 %580
        %582 = vrot.lane.b32.xlu0 %v428, 16
        %v583 = vpop.permute.xlu0 %582
        %vm586 = vcmask 130048
        %v587 = vsel %vm586, %v576, %v581
        %v588 = vsel %vm586, %v577, %v583
        %590 = vrot.lane.b32.xlu0 %v575, 110
        %v591 = vpop.permute.xlu0 %590
        %v592 = vsel %vm586, %v591, 0
        %594 = vmatprep.subr.mxu0 0.0
        %595 = vmatpush1.msra.mxu0 0.0
        %596 = vmatprep.subr.mxu0 0.0
        %597 = vmatpush1.msra.mxu0 0.0
        %598 = vmatprep.subr.mxu0 0.0
        %599 = vmatpush1.msra.mxu0 0.0
        %600 = vmatprep.subr.mxu0 0.0
        %601 = vmatpush1.msra.mxu0 0.0
        %602 = vmatprep.subr.mxu0 0.0
        %603 = vmatpush1.msra.mxu0 0.0
        %604 = vmatprep.subr.mxu0 0.0
        %605 = vmatpush1.msra.mxu0 0.0
        %606 = vmatprep.subr.mxu0 0.0
        %607 = vmatpush1.msra.mxu0 0.0
        %608 = vmatprep.subr.mxu0 0.0
        %609 = vmatpush1.msra.mxu0 0.0
        %610 = vmatprep.subr.mxu0 0.0
        %611 = vmatpush1.msra.mxu0 0.0
        %612 = vmatprep.subr.mxu0 0.0
        %613 = vmatpush1.msra.mxu0 0.0
        %614 = vmatprep.subr.mxu0 0.0
        %615 = vmatpush1.msra.mxu0 0.0
        %616 = vmatprep.subr.mxu0 0.0
        %617 = vmatpush1.msra.mxu0 0.0
        %618 = vmatprep.subr.mxu0 0.0
        %619 = vmatpush1.msra.mxu0 0.0
        %620 = vmatprep.subr.mxu0 0.0
        %621 = vmatpush1.msra.mxu0 0.0
        %622 = vmatprep.subr.mxu0 0.0
        %623 = vmatpush1.msra.mxu0 %v588
        %624 = vmatprep.subr.mxu0 0.0
        %625 = vmatpush1.msra.mxu0 %v587
        %626 = vmatprep.subr.mxu0 0.0
        %627 = vmatpush2.msra.mxu0 0.0
        %628 = vmatprep.subr.mxu0 0.0
        %629 = vmatpush2.msra.mxu0 0.0
        %630 = vmatprep.subr.mxu0 0.0
        %631 = vmatpush2.msra.mxu0 0.0
        %632 = vmatprep.subr.mxu0 0.0
        %633 = vmatpush2.msra.mxu0 0.0
        %634 = vmatprep.subr.mxu0 0.0
        %635 = vmatpush2.msra.mxu0 0.0
        %636 = vmatprep.subr.mxu0 0.0
        %637 = vmatpush2.msra.mxu0 0.0
        %638 = vmatprep.subr.mxu0 0.0
        %639 = vmatpush2.msra.mxu0 0.0
        %640 = vmatprep.subr.mxu0 0.0
        %641 = vmatpush2.msra.mxu0 0.0
        %642 = vmatprep.subr.mxu0 0.0
        %643 = vmatpush2.msra.mxu0 0.0
        %644 = vmatprep.subr.mxu0 0.0
        %645 = vmatpush2.msra.mxu0 0.0
        %646 = vmatprep.subr.mxu0 0.0
        %647 = vmatpush2.msra.mxu0 0.0
        %648 = vmatprep.subr.mxu0 0.0
        %649 = vmatpush2.msra.mxu0 0.0
        %650 = vmatprep.subr.mxu0 0.0
        %651 = vmatpush2.msra.mxu0 0.0
        %652 = vmatprep.subr.mxu0 0.0
        %653 = vmatpush2.msra.mxu0 0.0
        %654 = vmatprep.subr.mxu0 0.0
        %655 = vmatpush2.msra.mxu0 0.0
        %656 = vmatprep.subr.mxu0 0.0
        %657 = vmatpush2.msra.mxu0 0.0
        %658 = vmatprep.mubr.f32.mxu0 0.0
        %659 = vmatmul.mubr.f32.gmra.mxu0 %v592
        %v660 = vpop.f32.mrf.mxu0
        %v661 = vadd.f32 0.0, %v660
        %v662 = vpop.f32.mrf.mxu0
        %663 = vdwg.mxu0
        %v664 = vrcp.pop %v661
        %666 = vrot.lane.b32.xlu0 %v664, 112
        %v667 = vpop.permute.xlu0 %666
        %v669 = vmul.f32 %v661, %v667
        %v671 = vlaneseq
        %v672 = vshrl.u32 %v671, 7
        %v673 = vsub.s32 0, %v672
        %v674 = vrot.slane %v431, %v673
        %v676 = vadd.f32 %v669, %v674
        %v677 = vtanh.pop %v676
        %v678 = vld [vmem:[#allocation8] sm:$0xff]
        %v679 = vld [vmem:[#allocation8 + $0x8] sm:$0xff]
        %v680 = vld [vmem:[#allocation10] sm:$0x1]
        %v682 = vsel %vm586, %v677, 0
        %684 = vmatprep.subr.mxu0 0.0
        %685 = vmatpush1.msra.mxu0 0.0
        %686 = vmatprep.subr.mxu0 0.0
        %687 = vmatpush1.msra.mxu0 0.0
        %688 = vmatprep.subr.mxu0 0.0
        %689 = vmatpush1.msra.mxu0 0.0
        %690 = vmatprep.subr.mxu0 0.0
        %691 = vmatpush1.msra.mxu0 0.0
        %692 = vmatprep.subr.mxu0 0.0
        %693 = vmatpush1.msra.mxu0 0.0
        %694 = vmatprep.subr.mxu0 0.0
        %695 = vmatpush1.msra.mxu0 0.0
        %696 = vmatprep.subr.mxu0 0.0
        %697 = vmatpush1.msra.mxu0 0.0
        %698 = vmatprep.subr.mxu0 0.0
        %699 = vmatpush1.msra.mxu0 0.0
        %700 = vmatprep.subr.mxu0 0.0
        %701 = vmatpush1.msra.mxu0 0.0
        %702 = vmatprep.subr.mxu0 0.0
        %703 = vmatpush1.msra.mxu0 0.0
        %704 = vmatprep.subr.mxu0 0.0
        %705 = vmatpush1.msra.mxu0 0.0
        %706 = vmatprep.subr.mxu0 0.0
        %707 = vmatpush1.msra.mxu0 0.0
        %708 = vmatprep.subr.mxu0 0.0
        %709 = vmatpush1.msra.mxu0 0.0
        %710 = vmatprep.subr.mxu0 0.0
        %711 = vmatpush1.msra.mxu0 0.0
        %712 = vmatprep.subr.mxu0 0.0
        %713 = vmatpush1.msra.mxu0 %v679
        %714 = vmatprep.subr.mxu0 0.0
        %715 = vmatpush1.msra.mxu0 %v678
        %716 = vmatprep.subr.mxu0 0.0
        %717 = vmatpush2.msra.mxu0 0.0
        %718 = vmatprep.subr.mxu0 0.0
        %719 = vmatpush2.msra.mxu0 0.0
        %720 = vmatprep.subr.mxu0 0.0
        %721 = vmatpush2.msra.mxu0 0.0
        %722 = vmatprep.subr.mxu0 0.0
        %723 = vmatpush2.msra.mxu0 0.0
        %724 = vmatprep.subr.mxu0 0.0
        %725 = vmatpush2.msra.mxu0 0.0
        %726 = vmatprep.subr.mxu0 0.0
        %727 = vmatpush2.msra.mxu0 0.0
        %728 = vmatprep.subr.mxu0 0.0
        %729 = vmatpush2.msra.mxu0 0.0
        %730 = vmatprep.subr.mxu0 0.0
        %731 = vmatpush2.msra.mxu0 0.0
        %732 = vmatprep.subr.mxu0 0.0
        %733 = vmatpush2.msra.mxu0 0.0
        %734 = vmatprep.subr.mxu0 0.0
        %735 = vmatpush2.msra.mxu0 0.0
        %736 = vmatprep.subr.mxu0 0.0
        %737 = vmatpush2.msra.mxu0 0.0
        %738 = vmatprep.subr.mxu0 0.0
        %739 = vmatpush2.msra.mxu0 0.0
        %740 = vmatprep.subr.mxu0 0.0
        %741 = vmatpush2.msra.mxu0 0.0
        %742 = vmatprep.subr.mxu0 0.0
        %743 = vmatpush2.msra.mxu0 0.0
        %744 = vmatprep.subr.mxu0 0.0
        %745 = vmatpush2.msra.mxu0 0.0
        %746 = vmatprep.subr.mxu0 0.0
        %747 = vmatpush2.msra.mxu0 0.0
        %748 = vmatprep.mubr.f32.mxu0 0.0
        %749 = vmatmul.mubr.f32.gmra.mxu0 %v682
        %v750 = vpop.f32.mrf.mxu0
        %v751 = vadd.f32 0.0, %v750
        %v752 = vpop.f32.mrf.mxu0
        %753 = vdwg.mxu0
        %755 = vrot.lane.b32.xlu0 %v751, 112
        %v756 = vpop.permute.xlu0 %755
        %758 = vxpose.xlu0.b32.start [1/16] %v756, 128
        %759 = vxpose.xlu0.b32.cont [2/16] 0.0, 128
        %760 = vxpose.xlu0.b32.cont [3/16] 0.0, 128
        %761 = vxpose.xlu0.b32.cont [4/16] 0.0, 128
        %762 = vxpose.xlu0.b32.cont [5/16] 0.0, 128
        %763 = vxpose.xlu0.b32.cont [6/16] 0.0, 128
        %764 = vxpose.xlu0.b32.cont [7/16] 0.0, 128
        %765 = vxpose.xlu0.b32.cont [8/16] 0.0, 128
        %766 = vxpose.xlu0.b32.cont [9/16] 0.0, 128
        %767 = vxpose.xlu0.b32.cont [10/16] 0.0, 128
        %768 = vxpose.xlu0.b32.cont [11/16] 0.0, 128
        %769 = vxpose.xlu0.b32.cont [12/16] 0.0, 128
        %770 = vxpose.xlu0.b32.cont [13/16] 0.0, 128
        %771 = vxpose.xlu0.b32.cont [14/16] 0.0, 128
        %772 = vxpose.xlu0.b32.cont [15/16] 0.0, 128
        %773 = vxpose.xlu0.b32.end [16/16] 0.0, 128
        %v774 = vpop.trf.xlu0
        %v775 = vpop.trf.xlu0
        %v776 = vpop.trf.xlu0
        %v777 = vpop.trf.xlu0
        %v778 = vpop.trf.xlu0
        %v779 = vpop.trf.xlu0
        %v780 = vpop.trf.xlu0
        %v781 = vpop.trf.xlu0
        %v782 = vpop.trf.xlu0
        %v783 = vpop.trf.xlu0
        %v784 = vpop.trf.xlu0
        %v785 = vpop.trf.xlu0
        %v786 = vpop.trf.xlu0
        %v787 = vpop.trf.xlu0
        %v788 = vpop.trf.xlu0
        %v789 = vpop.trf.xlu0
        %v791 = vrot.slane %v774, 1
        %792 = vrot.lane.b32.xlu0 %v791, 8
        %v793 = vpop.permute.xlu0 %792
        %v795 = vsel %vm425, %v774, %v793
        %v796 = vlaneseq
        %v797 = vshrl.u32 %v796, 7
        %v798 = vsub.s32 0, %v797
        %v799 = vrot.slane %v795, %v798
        %801 = vrot.lane.b32.xlu0 %v799, 18
        %v802 = vpop.permute.xlu0 %801
        %v804 = vadd.f32 %v751, %v802
        %vm805 = vcmp.gt.f32.partialorder %v804, 0.0
        %v806 = vmul.f32 %v804, 0.2
        %v807 = vsel %vm805, %v804, %v806
        %v808 = vadd.f32 %v807, %v566
        %v809 = vsel %vm569, %v808, -inf
        %810 = vmax.xlane.f32.xlu0 %v809
        %v811 = vpop.xlane.xlu0 %810
        %v812 = vsub.f32 %v808, %v811
        %v813 = vmul.f32 %v812, 1.442695
        %v814 = vpow.pop %v813
        %v815 = vmul.f32 %v751, %v427
        %v816 = vmul.f32 %v751, %v428
        %v817 = vsel %vm586, %v815, %v581
        %v818 = vsel %vm586, %v816, %v583
        %820 = vrot.lane.b32.xlu0 %v814, 110
        %v821 = vpop.permute.xlu0 %820
        %v822 = vsel %vm586, %v821, 0
        %824 = vmatprep.subr.mxu0 0.0
        %825 = vmatpush1.msra.mxu0 0.0
        %826 = vmatprep.subr.mxu0 0.0
        %827 = vmatpush1.msra.mxu0 0.0
        %828 = vmatprep.subr.mxu0 0.0
        %829 = vmatpush1.msra.mxu0 0.0
        %830 = vmatprep.subr.mxu0 0.0
        %831 = vmatpush1.msra.mxu0 0.0
        %832 = vmatprep.subr.mxu0 0.0
        %833 = vmatpush1.msra.mxu0 0.0
        %834 = vmatprep.subr.mxu0 0.0
        %835 = vmatpush1.msra.mxu0 0.0
        %836 = vmatprep.subr.mxu0 0.0
        %837 = vmatpush1.msra.mxu0 0.0
        %838 = vmatprep.subr.mxu0 0.0
        %839 = vmatpush1.msra.mxu0 0.0
        %840 = vmatprep.subr.mxu0 0.0
        %841 = vmatpush1.msra.mxu0 0.0
        %842 = vmatprep.subr.mxu0 0.0
        %843 = vmatpush1.msra.mxu0 0.0
        %844 = vmatprep.subr.mxu0 0.0
        %845 = vmatpush1.msra.mxu0 0.0
        %846 = vmatprep.subr.mxu0 0.0
        %847 = vmatpush1.msra.mxu0 0.0
        %848 = vmatprep.subr.mxu0 0.0
        %849 = vmatpush1.msra.mxu0 0.0
        %850 = vmatprep.subr.mxu0 0.0
        %851 = vmatpush1.msra.mxu0 0.0
        %852 = vmatprep.subr.mxu0 0.0
        %853 = vmatpush1.msra.mxu0 %v818
        %854 = vmatprep.subr.mxu0 0.0
        %855 = vmatpush1.msra.mxu0 %v817
        %856 = vmatprep.subr.mxu0 0.0
        %857 = vmatpush2.msra.mxu0 0.0
        %858 = vmatprep.subr.mxu0 0.0
        %859 = vmatpush2.msra.mxu0 0.0
        %860 = vmatprep.subr.mxu0 0.0
        %861 = vmatpush2.msra.mxu0 0.0
        %862 = vmatprep.subr.mxu0 0.0
        %863 = vmatpush2.msra.mxu0 0.0
        %864 = vmatprep.subr.mxu0 0.0
        %865 = vmatpush2.msra.mxu0 0.0
        %866 = vmatprep.subr.mxu0 0.0
        %867 = vmatpush2.msra.mxu0 0.0
        %868 = vmatprep.subr.mxu0 0.0
        %869 = vmatpush2.msra.mxu0 0.0
        %870 = vmatprep.subr.mxu0 0.0
        %871 = vmatpush2.msra.mxu0 0.0
        %872 = vmatprep.subr.mxu0 0.0
        %873 = vmatpush2.msra.mxu0 0.0
        %874 = vmatprep.subr.mxu0 0.0
        %875 = vmatpush2.msra.mxu0 0.0
        %876 = vmatprep.subr.mxu0 0.0
        %877 = vmatpush2.msra.mxu0 0.0
        %878 = vmatprep.subr.mxu0 0.0
        %879 = vmatpush2.msra.mxu0 0.0
        %880 = vmatprep.subr.mxu0 0.0
        %881 = vmatpush2.msra.mxu0 0.0
        %882 = vmatprep.subr.mxu0 0.0
        %883 = vmatpush2.msra.mxu0 0.0
        %884 = vmatprep.subr.mxu0 0.0
        %885 = vmatpush2.msra.mxu0 0.0
        %886 = vmatprep.subr.mxu0 0.0
        %887 = vmatpush2.msra.mxu0 0.0
        %888 = vmatprep.mubr.f32.mxu0 0.0
        %889 = vmatmul.mubr.f32.gmra.mxu0 %v822
        %v890 = vpop.f32.mrf.mxu0
        %v891 = vadd.f32 0.0, %v890
        %v892 = vpop.f32.mrf.mxu0
        %893 = vdwg.mxu0
        %v894 = vrcp.pop %v891
        %896 = vrot.lane.b32.xlu0 %v894, 112
        %v897 = vpop.permute.xlu0 %896
        %v899 = vmul.f32 %v891, %v897
        %v901 = vlaneseq
        %v902 = vshrl.u32 %v901, 7
        %v903 = vsub.s32 0, %v902
        %v904 = vrot.slane %v680, %v903
        %v906 = vadd.f32 %v899, %v904
        %v907 = vtanh.pop %v906
        %v908 = vld [vmem:[%s7] sm:$0xff]
        %v909 = vld [vmem:[%s7 + $0x8] sm:$0xff]
        %v910 = vld [vmem:[%s8] sm:$0x1]
        %v912 = vsel %vm586, %v907, 0
        %914 = vmatprep.subr.mxu0 0.0
        %915 = vmatpush1.msra.mxu0 0.0
        %916 = vmatprep.subr.mxu0 0.0
        %917 = vmatpush1.msra.mxu0 0.0
        %918 = vmatprep.subr.mxu0 0.0
        %919 = vmatpush1.msra.mxu0 0.0
        %920 = vmatprep.subr.mxu0 0.0
        %921 = vmatpush1.msra.mxu0 0.0
        %922 = vmatprep.subr.mxu0 0.0
        %923 = vmatpush1.msra.mxu0 0.0
        %924 = vmatprep.subr.mxu0 0.0
        %925 = vmatpush1.msra.mxu0 0.0
        %926 = vmatprep.subr.mxu0 0.0
        %927 = vmatpush1.msra.mxu0 0.0
        %928 = vmatprep.subr.mxu0 0.0
        %929 = vmatpush1.msra.mxu0 0.0
        %930 = vmatprep.subr.mxu0 0.0
        %931 = vmatpush1.msra.mxu0 0.0
        %932 = vmatprep.subr.mxu0 0.0
        %933 = vmatpush1.msra.mxu0 0.0
        %934 = vmatprep.subr.mxu0 0.0
        %935 = vmatpush1.msra.mxu0 0.0
        %936 = vmatprep.subr.mxu0 0.0
        %937 = vmatpush1.msra.mxu0 0.0
        %938 = vmatprep.subr.mxu0 0.0
        %939 = vmatpush1.msra.mxu0 0.0
        %940 = vmatprep.subr.mxu0 0.0
        %941 = vmatpush1.msra.mxu0 0.0
        %942 = vmatprep.subr.mxu0 0.0
        %943 = vmatpush1.msra.mxu0 %v909
        %944 = vmatprep.subr.mxu0 0.0
        %945 = vmatpush1.msra.mxu0 %v908
        %946 = vmatprep.subr.mxu0 0.0
        %947 = vmatpush2.msra.mxu0 0.0
        %948 = vmatprep.subr.mxu0 0.0
        %949 = vmatpush2.msra.mxu0 0.0
        %950 = vmatprep.subr.mxu0 0.0
        %951 = vmatpush2.msra.mxu0 0.0
        %952 = vmatprep.subr.mxu0 0.0
        %953 = vmatpush2.msra.mxu0 0.0
        %954 = vmatprep.subr.mxu0 0.0
        %955 = vmatpush2.msra.mxu0 0.0
        %956 = vmatprep.subr.mxu0 0.0
        %957 = vmatpush2.msra.mxu0 0.0
        %958 = vmatprep.subr.mxu0 0.0
        %959 = vmatpush2.msra.mxu0 0.0
        %960 = vmatprep.subr.mxu0 0.0
        %961 = vmatpush2.msra.mxu0 0.0
        %962 = vmatprep.subr.mxu0 0.0
        %963 = vmatpush2.msra.mxu0 0.0
        %964 = vmatprep.subr.mxu0 0.0
        %965 = vmatpush2.msra.mxu0 0.0
        %966 = vmatprep.subr.mxu0 0.0
        %967 = vmatpush2.msra.mxu0 0.0
        %968 = vmatprep.subr.mxu0 0.0
        %969 = vmatpush2.msra.mxu0 0.0
        %970 = vmatprep.subr.mxu0 0.0
        %971 = vmatpush2.msra.mxu0 0.0
        %972 = vmatprep.subr.mxu0 0.0
        %973 = vmatpush2.msra.mxu0 0.0
        %974 = vmatprep.subr.mxu0 0.0
        %975 = vmatpush2.msra.mxu0 0.0
        %976 = vmatprep.subr.mxu0 0.0
        %977 = vmatpush2.msra.mxu0 0.0
        %978 = vmatprep.mubr.f32.mxu0 0.0
        %979 = vmatmul.mubr.f32.gmra.mxu0 %v912
        %v980 = vpop.f32.mrf.mxu0
        %v981 = vadd.f32 0.0, %v980
        %v982 = vpop.f32.mrf.mxu0
        %983 = vdwg.mxu0
        %985 = vrot.lane.b32.xlu0 %v981, 112
        %v986 = vpop.permute.xlu0 %985
        %988 = vxpose.xlu0.b32.start [1/16] %v986, 128
        %989 = vxpose.xlu0.b32.cont [2/16] 0.0, 128
        %990 = vxpose.xlu0.b32.cont [3/16] 0.0, 128
        %991 = vxpose.xlu0.b32.cont [4/16] 0.0, 128
        %992 = vxpose.xlu0.b32.cont [5/16] 0.0, 128
        %993 = vxpose.xlu0.b32.cont [6/16] 0.0, 128
        %994 = vxpose.xlu0.b32.cont [7/16] 0.0, 128
        %995 = vxpose.xlu0.b32.cont [8/16] 0.0, 128
        %996 = vxpose.xlu0.b32.cont [9/16] 0.0, 128
        %997 = vxpose.xlu0.b32.cont [10/16] 0.0, 128
        %998 = vxpose.xlu0.b32.cont [11/16] 0.0, 128
        %999 = vxpose.xlu0.b32.cont [12/16] 0.0, 128
        %1000 = vxpose.xlu0.b32.cont [13/16] 0.0, 128
        %1001 = vxpose.xlu0.b32.cont [14/16] 0.0, 128
        %1002 = vxpose.xlu0.b32.cont [15/16] 0.0, 128
        %1003 = vxpose.xlu0.b32.end [16/16] 0.0, 128
        %v1004 = vpop.trf.xlu0
        %v1005 = vpop.trf.xlu0
        %v1006 = vpop.trf.xlu0
        %v1007 = vpop.trf.xlu0
        %v1008 = vpop.trf.xlu0
        %v1009 = vpop.trf.xlu0
        %v1010 = vpop.trf.xlu0
        %v1011 = vpop.trf.xlu0
        %v1012 = vpop.trf.xlu0
        %v1013 = vpop.trf.xlu0
        %v1014 = vpop.trf.xlu0
        %v1015 = vpop.trf.xlu0
        %v1016 = vpop.trf.xlu0
        %v1017 = vpop.trf.xlu0
        %v1018 = vpop.trf.xlu0
        %v1019 = vpop.trf.xlu0
        %v1021 = vrot.slane %v1004, 1
        %1022 = vrot.lane.b32.xlu0 %v1021, 8
        %v1023 = vpop.permute.xlu0 %1022
        %v1025 = vsel %vm425, %v1004, %v1023
        %v1026 = vlaneseq
        %v1027 = vshrl.u32 %v1026, 7
        %v1028 = vsub.s32 0, %v1027
        %v1029 = vrot.slane %v1025, %v1028
        %1031 = vrot.lane.b32.xlu0 %v1029, 18
        %v1032 = vpop.permute.xlu0 %1031
        %v1034 = vadd.f32 %v981, %v1032
        %vm1035 = vcmp.gt.f32.partialorder %v1034, 0.0
        %v1036 = vmul.f32 %v1034, 0.2
        %v1037 = vsel %vm1035, %v1034, %v1036
        %v1038 = vadd.f32 %v1037, %v566
        %v1039 = vsel %vm569, %v1038, -inf
        %1040 = vmax.xlane.f32.xlu0 %v1039
        %v1041 = vpop.xlane.xlu0 %1040
        %v1042 = vsub.f32 %v1038, %v1041
        %v1043 = vmul.f32 %v1042, 1.442695
        %v1044 = vpow.pop %v1043
        %v1045 = vmul.f32 %v981, %v427
        %v1046 = vmul.f32 %v981, %v428
        %v1047 = vsel %vm586, %v1045, %v581
        %v1048 = vsel %vm586, %v1046, %v583
        %1050 = vrot.lane.b32.xlu0 %v1044, 110
        %v1051 = vpop.permute.xlu0 %1050
        %v1052 = vsel %vm586, %v1051, 0
        %1054 = vmatprep.subr.mxu0 0.0
        %1055 = vmatpush1.msra.mxu0 0.0
        %1056 = vmatprep.subr.mxu0 0.0
        %1057 = vmatpush1.msra.mxu0 0.0
        %1058 = vmatprep.subr.mxu0 0.0
        %1059 = vmatpush1.msra.mxu0 0.0
        %1060 = vmatprep.subr.mxu0 0.0
        %1061 = vmatpush1.msra.mxu0 0.0
        %1062 = vmatprep.subr.mxu0 0.0
        %1063 = vmatpush1.msra.mxu0 0.0
        %1064 = vmatprep.subr.mxu0 0.0
        %1065 = vmatpush1.msra.mxu0 0.0
        %1066 = vmatprep.subr.mxu0 0.0
        %1067 = vmatpush1.msra.mxu0 0.0
        %1068 = vmatprep.subr.mxu0 0.0
        %1069 = vmatpush1.msra.mxu0 0.0
        %1070 = vmatprep.subr.mxu0 0.0
        %1071 = vmatpush1.msra.mxu0 0.0
        %1072 = vmatprep.subr.mxu0 0.0
        %1073 = vmatpush1.msra.mxu0 0.0
        %1074 = vmatprep.subr.mxu0 0.0
        %1075 = vmatpush1.msra.mxu0 0.0
        %1076 = vmatprep.subr.mxu0 0.0
        %1077 = vmatpush1.msra.mxu0 0.0
        %1078 = vmatprep.subr.mxu0 0.0
        %1079 = vmatpush1.msra.mxu0 0.0
        %1080 = vmatprep.subr.mxu0 0.0
        %1081 = vmatpush1.msra.mxu0 0.0
        %1082 = vmatprep.subr.mxu0 0.0
        %1083 = vmatpush1.msra.mxu0 %v1048
        %1084 = vmatprep.subr.mxu0 0.0
        %1085 = vmatpush1.msra.mxu0 %v1047
        %1086 = vmatprep.subr.mxu0 0.0
        %1087 = vmatpush2.msra.mxu0 0.0
        %1088 = vmatprep.subr.mxu0 0.0
        %1089 = vmatpush2.msra.mxu0 0.0
        %1090 = vmatprep.subr.mxu0 0.0
        %1091 = vmatpush2.msra.mxu0 0.0
        %1092 = vmatprep.subr.mxu0 0.0
        %1093 = vmatpush2.msra.mxu0 0.0
        %1094 = vmatprep.subr.mxu0 0.0
        %1095 = vmatpush2.msra.mxu0 0.0
        %1096 = vmatprep.subr.mxu0 0.0
        %1097 = vmatpush2.msra.mxu0 0.0
        %1098 = vmatprep.subr.mxu0 0.0
        %1099 = vmatpush2.msra.mxu0 0.0
        %1100 = vmatprep.subr.mxu0 0.0
        %1101 = vmatpush2.msra.mxu0 0.0
        %1102 = vmatprep.subr.mxu0 0.0
        %1103 = vmatpush2.msra.mxu0 0.0
        %1104 = vmatprep.subr.mxu0 0.0
        %1105 = vmatpush2.msra.mxu0 0.0
        %1106 = vmatprep.subr.mxu0 0.0
        %1107 = vmatpush2.msra.mxu0 0.0
        %1108 = vmatprep.subr.mxu0 0.0
        %1109 = vmatpush2.msra.mxu0 0.0
        %1110 = vmatprep.subr.mxu0 0.0
        %1111 = vmatpush2.msra.mxu0 0.0
        %1112 = vmatprep.subr.mxu0 0.0
        %1113 = vmatpush2.msra.mxu0 0.0
        %1114 = vmatprep.subr.mxu0 0.0
        %1115 = vmatpush2.msra.mxu0 0.0
        %1116 = vmatprep.subr.mxu0 0.0
        %1117 = vmatpush2.msra.mxu0 0.0
        %1118 = vmatprep.mubr.f32.mxu0 0.0
        %1119 = vmatmul.mubr.f32.gmra.mxu0 %v1052
        %v1120 = vpop.f32.mrf.mxu0
        %v1121 = vadd.f32 0.0, %v1120
        %v1122 = vpop.f32.mrf.mxu0
        %1123 = vdwg.mxu0
        %v1124 = vrcp.pop %v1121
        %1126 = vrot.lane.b32.xlu0 %v1124, 112
        %v1127 = vpop.permute.xlu0 %1126
        %v1129 = vmul.f32 %v1121, %v1127
        %v1131 = vlaneseq
        %v1132 = vshrl.u32 %v1131, 7
        %v1133 = vsub.s32 0, %v1132
        %v1134 = vrot.slane %v910, %v1133
        %v1136 = vadd.f32 %v1129, %v1134
        %v1137 = vtanh.pop %v1136
        %v1138 = vsel %vm586, %v1137, -inf
        %v1139 = vrot.slane %v1138, 4
        %v1140 = vmax.f32 %v1138, %v1139
        %v1141 = vrot.slane %v1140, 2
        %v1142 = vmax.f32 %v1140, %v1141
        %v1143 = vrot.slane %v1142, 1
        %v1144 = vmax.f32 %v1142, %v1143
        %v1145 = vsel %vm586, %v1137, 0.0
        %v1146 = vrot.slane %v1145, 4
        %v1147 = vadd.f32 %v1145, %v1146
        %v1148 = vrot.slane %v1147, 2
        %v1149 = vadd.f32 %v1147, %v1148
        %v1150 = vrot.slane %v1149, 1
        %v1151 = vadd.f32 %v1149, %v1150
        %v1152 = vmul.f32 %v1151, 0.125
        %1154 = vrot.lane.b32.xlu0 %v1152, 16
        %v1155 = vpop.permute.xlu0 %1154
        %v1157 = vsel %vm586, %v1144, %v1155
        %vm1158 = vcmask 253952
        %1159 = vst.msk [vmem:[%s411] sm:$0x1] %vm1158, %v1157
        %s1160 = sand.u32 %s235, 1
        %s1161 = scalar_lea.sflag [#allocation4], %s1160
        %s1162 = sand.u32 %s235, 1
        %s1163 = scalar_lea.vmem [#allocation11], %s1162
        // Predicated region
        $region77: #{tpu_custom_call.1} parent=55 // pred_check
          %p1164 = pneg %p245
        $region78: #{tpu_custom_call.1} parent=55 // pred_check_branch
          %1166 = sbr.rel (%p1164) target = $region80
        $region79: #{tpu_custom_call.1} parent=55 // pred_region
          %s1168 = ssub.s32 16, 16
          %1169 = vsyncadd %s1161, %s1168
          %s1170 = smul.addr %s28, 16
          %s1171 = scalar_lea.hbm %s9, %s1170
          %s1173 = sshll.u32 %s1163, 4
          %s1174 = int_to_ptr.vmem [resolvable:$true] %s1173
          %1176 = dma.vmem_to_hbm [thread:$0]  %s1174, 16, %s1171, %s1161
        $region80: #{tpu_custom_call.1} parent=55 // pred_fallthru
          _
      $region56: #{tpu_custom_call.1} parent=5 // pred_fallthru
        _
      %p1177 = scmp.le.s32.totalorder 2, %s23
      // Predicated region
      $region81: #{tpu_custom_call.1} parent=5 // pred_check
        %p1178 = pneg %p1177
      $region82: #{tpu_custom_call.1} parent=5 // pred_check_branch
        %1180 = sbr.rel (%p1178) target = $region84
      $region83: #{tpu_custom_call.1} parent=5 // pred_region
        %s1181 = ssub.s32 %s23, 2
        // Predicated region
        $region85: #{tpu_custom_call.1} parent=83 // pred_check
          %p1182 = pneg %p251
        $region86: #{tpu_custom_call.1} parent=83 // pred_check_branch
          %1184 = sbr.rel (%p1182) target = $region88
        $region87: #{tpu_custom_call.1} parent=83 // pred_region
          %s1185 = sand.u32 %s236, 1
          %s1186 = scalar_lea.sflag [#allocation4], %s1185
          %s1187 = sand.u32 %s236, 1
          %s1188 = scalar_lea.vmem [#allocation11], %s1187
          %1189 = dma.done %s1186, 16
        $region88: #{tpu_custom_call.1} parent=83 // pred_fallthru
          _
      $region84: #{tpu_custom_call.1} parent=5 // pred_fallthru
        _
    $region6: #{tpu_custom_call.1} parent=1 // loop_footer
      %s27 = sadd.s32 1, %s23
    $region7: #{tpu_custom_call.1} parent=1 // loop_footer_branch
      %22 = sbr.rel target = $region3
    $region8: #{tpu_custom_call.1} parent=1 // loop_exit
      _
    %1190 = vsyncpa [#allocation3], 1
    %s1191 = scalar_lea.sflag [#allocation3], 1
    %1192 = vsyncpa %s1191, 1
    %1193 = vsyncpa [#allocation6], 1
    %1194 = vsyncpa [#allocation9], 1
    %1195 = vsyncpa [#allocation4], 1
    %s1196 = scalar_lea.sflag [#allocation4], 1
    %1197 = vsyncpa %s1196, 1

</llo_original>
